<compile_context>
chip_gen: v7x
topology: tpu7x:2x2x1
jax: 0.10.0
libtpu: 0.0.40
codegen_flags: <defaults>
</compile_context>

<pallas_src>
import jax
import jax.numpy as jnp
import numpy as np
from jax.experimental import pallas as pl
from jax.experimental.pallas import tpu as pltpu


def _gelu(x):
    # tanh-approx GELU (EUP-friendly).  PyTorch nn.GELU() default is the exact erf
    # form; the difference is tiny at these magnitudes and matches the reference.
    c = 0.7978845608028654  # sqrt(2/pi)
    return 0.5 * x * (1.0 + jnp.tanh(c * (x + 0.044715 * x * x * x)))


def _make_kernel(num_heads: int, tau: float):
    inv_tau = 1.0 / tau

    def kernel(
        x_ref,                      # (N, D)   f32  slab for grid point (b, t)
        wqkv_ref, bqkv_ref,         # (D, 3D)  f32, (1, 3D) f32  (fused Q/K/V)
        wp_ref, bp_ref,             # (D, D)   bf16, (1, D) f32
        w1_ref, b1_ref,             # (D, Hm)  bf16, (1, Hm) f32
        w2_ref, b2_ref,             # (Hm, D)  bf16, (1, D) f32
        out_ref,                    # (N, D)   f32
        attn_ref,                   # (H, N, N) f32  (already in final layout)
        qkv_mem,                    # (N, 3D)  f32  LIF membranes for q/k/v
        a_mem,                      # (N, D)   f32  LIF membrane for attn output
    ):
        t = pl.program_id(1)

        # Each batch block starts its own time sequence -> reset membranes.
        @pl.when(t == 0)
        def _():
            qkv_mem[...] = jnp.zeros_like(qkv_mem)
            a_mem[...] = jnp.zeros_like(a_mem)

        def lif(charge, mem_ref):
            # MultiStepLIF (tau=2, hard reset to 0); kept entirely in f32 so the
            # v >= 1.0 threshold never sees bf16 rounding.
            v = mem_ref[...] + (charge - mem_ref[...]) * inv_tau
            spike = (v >= 1.0).astype(jnp.float32)
            mem_ref[...] = v * (1.0 - spike)
            return spike

        x = x_ref[...]                                   # (N, D) f32
        N, D = x.shape
        H = num_heads
        Dh = D // H
        scale = Dh ** -0.5

        # ---- fused Q/K/V projection (f32: x is real-valued, feeds a threshold) ---
        qkv = jnp.dot(x, wqkv_ref[...],
                      preferred_element_type=jnp.float32) + bqkv_ref[...]
        spk = lif(qkv, qkv_mem)                          # (N, 3D) spikes in {0, 1}

        # ---- batched multi-head attention on bf16 spikes (lossless cast) ---------
        def heads(z):                                    # (N, D) -> (H, N, Dh) bf16
            return jnp.transpose(z.reshape(N, H, Dh), (1, 0, 2)).astype(jnp.bfloat16)

        qh = heads(spk[:, 0 * D:1 * D] * scale)          # scale folded into q
        kh = heads(spk[:, 1 * D:2 * D])
        vh = heads(spk[:, 2 * D:3 * D])

        # TODO(synk): for realistic N, tile the query rows here (pl.loop / extra
        # grid axis) instead of materializing the full (H, N, N) score block.
        attn = jnp.einsum('hnd,hmd->hnm', qh, kh,
                          preferred_element_type=jnp.float32)        # (H, N, N)
        attn_ref[...] = attn                                          # final layout

        ho = jnp.einsum('hnm,hmd->hnd', attn.astype(jnp.bfloat16), vh,
                        preferred_element_type=jnp.float32)           # (H, N, Dh)
        attn_x = jnp.transpose(ho, (1, 0, 2)).reshape(N, D)           # (N, D) f32

        s = lif(attn_x, a_mem)                                        # spikes {0,1}
        x_att = jnp.dot(s.astype(jnp.bfloat16), wp_ref[...],
                        preferred_element_type=jnp.float32) + bp_ref[...]

        # ---- residual 1 -----------------------------------------------------------
        x1 = x + x_att

        # ---- non-spiking MLP (Linear -> GELU -> Linear) + residual 2 --------------
        h1 = jnp.dot(x1.astype(jnp.bfloat16), w1_ref[...],
                     preferred_element_type=jnp.float32) + b1_ref[...]
        g = _gelu(h1)                                                  # f32 GELU
        m = jnp.dot(g.astype(jnp.bfloat16), w2_ref[...],
                    preferred_element_type=jnp.float32) + b2_ref[...]

        out_ref[...] = x1 + m

    return kernel


def partially_spiking_decoder_block(x, params, *, num_heads, tau=2.0):
    """x: [T, B, N, D] float32.  Returns (out [T,B,N,D], attn [T,B,H,N,N])."""
    T, B, N, D = x.shape
    H = num_heads
    Hm = params['w1'].shape[1]

    # Fuse Q/K/V weights into one (D, 3D) matmul; keep f32 (real-valued input,
    # feeds the LIF threshold).  Spike-facing / post-residual weights go to bf16.
    wqkv = jnp.concatenate([params['wq'], params['wk'], params['wv']], axis=1)
    bqkv = jnp.concatenate([params['bq'], params['bk'], params['bv']], axis=1)
    wp = params['wp'].astype(jnp.bfloat16)
    w1 = params['w1'].astype(jnp.bfloat16)
    w2 = params['w2'].astype(jnp.bfloat16)

    def full_spec(shape):
        nd = len(shape)
        return pl.BlockSpec(shape, lambda b, t, _nd=nd: (0,) * _nd)

    in_specs = [
        pl.BlockSpec((None, None, N, D), lambda b, t: (t, b, 0, 0)),   # x slab (b,t)
        full_spec((D, 3 * D)), full_spec((1, 3 * D)),                  # wqkv, bqkv
        full_spec((D, D)), full_spec((1, D)),                          # wp, bp
        full_spec((D, Hm)), full_spec((1, Hm)),                        # w1, b1
        full_spec((Hm, D)), full_spec((1, D)),                         # w2, b2
    ]
    out_specs = [
        pl.BlockSpec((None, None, N, D), lambda b, t: (t, b, 0, 0)),
        pl.BlockSpec((None, None, H, N, N), lambda b, t: (t, b, 0, 0, 0)),
    ]
    out_shape = (
        jax.ShapeDtypeStruct((T, B, N, D), jnp.float32),
        jax.ShapeDtypeStruct((T, B, H, N, N), jnp.float32),
    )

    # Advisory cost estimate for the XLA scheduler.
    flops = 2 * T * B * N * D * (4 * D + 2 * N + 2 * Hm)
    bytes_accessed = (
        2 * T * B * N * D * 4 + T * B * H * N * N * 4       # x in, out, attn out
        + (D * 3 * D + 3 * D + 2 * D + Hm) * 4              # f32 wqkv + biases
        + (D * D + 2 * D * Hm) * 2                          # bf16 wp, w1, w2
    )
    cost = pl.CostEstimate(flops=flops, transcendentals=T * B * N * Hm,
                           bytes_accessed=bytes_accessed)

    kernel = _make_kernel(num_heads, tau)

    out, attn = pl.pallas_call(
        kernel,
        out_shape=out_shape,
        grid_spec=pltpu.PrefetchScalarGridSpec(
            num_scalar_prefetch=0,
            grid=(B, T),                                     # B parallel, T sequential
            in_specs=in_specs,
            out_specs=out_specs,
            scratch_shapes=[pltpu.VMEM((N, 3 * D), jnp.float32),
                            pltpu.VMEM((N, D), jnp.float32)],
        ),
        compiler_params=pltpu.CompilerParams(
            dimension_semantics=("parallel", "arbitrary"),   # LIF state carried over T
            vmem_limit_bytes=48 * 1024 * 1024,               # headroom under v7x 64 MiB
        ),
        cost_estimate=cost,
    )(x, wqkv, bqkv, wp, params['bp'], w1, params['b1'], w2, params['b2'])

    # attn already in [T, B, H, N, N]; no wrapper transpose needed.
    return out, attn


def reference(x, p, num_heads, tau=2.0):
    """Pure-JAX f32 reference of the same forward pass (faithful to the module)."""
    T, B, N, D = x.shape
    H = num_heads
    Dh = D // H
    scale = Dh ** -0.5
    qm = km = vm = am = jnp.zeros((B, N, D), jnp.float32)

    def lif(c, m):
        v = m + (c - m) / tau
        s = (v >= 1.0).astype(jnp.float32)
        return s, v * (1.0 - s)

    outs, attns = [], []
    for t in range(T):
        xt = x[t]
        q, qm = lif(jnp.einsum('bnd,de->bne', xt, p['wq'],
                               precision='highest') + p['bq'], qm)
        k, km = lif(jnp.einsum('bnd,de->bne', xt, p['wk'],
                               precision='highest') + p['bk'], km)
        v_, vm = lif(jnp.einsum('bnd,de->bne', xt, p['wv'],
                                precision='highest') + p['bv'], vm)
        head_o, head_a = [], []
        for h in range(H):
            qh = q[..., h * Dh:(h + 1) * Dh]
            kh = k[..., h * Dh:(h + 1) * Dh]
            vh = v_[..., h * Dh:(h + 1) * Dh]
            a = jnp.einsum('bnd,bmd->bnm', qh, kh) * scale
            head_a.append(a)
            head_o.append(jnp.einsum('bnm,bmd->bnd', a, vh))
        attn_x = jnp.concatenate(head_o, axis=-1)
        s, am = lif(attn_x, am)
        x1 = xt + (s @ p['wp'] + p['bp'])
        m = _gelu(x1 @ p['w1'] + p['b1']) @ p['w2'] + p['b2']
        outs.append(x1 + m)
        attns.append(jnp.stack(head_a, axis=1))
    return jnp.stack(outs, 0), jnp.stack(attns, 0)


def init_params(key, embed_dim, dim_hid):
    ks = jax.random.split(key, 12)
    D, Hm = embed_dim, dim_hid
    w = lambda k, s, sc: (jax.random.normal(k, s, jnp.float32) * sc)
    return {
        'wq': w(ks[0], (D, D), 0.3), 'bq': w(ks[1], (1, D), 0.05),
        'wk': w(ks[2], (D, D), 0.3), 'bk': w(ks[3], (1, D), 0.05),
        'wv': w(ks[4], (D, D), 0.3), 'bv': w(ks[5], (1, D), 0.05),
        'wp': w(ks[6], (D, D), 0.3), 'bp': w(ks[7], (1, D), 0.05),
        'w1': w(ks[8], (D, Hm), 0.1), 'b1': w(ks[9], (1, Hm), 0.05),
        'w2': w(ks[10], (Hm, D), 0.1), 'b2': w(ks[11], (1, D), 0.05),
    }


if __name__ == "__main__":
    # Small shapes: T=2 time steps, batch=2, seq=8, embed=32, heads=2, mlp hidden=64
    T, B, N, D, H, HID = 2, 2, 8, 32, 2, 64

    key = jax.random.PRNGKey(0)
    kx, kp = jax.random.split(key)
    x = jax.random.normal(kx, (T, B, N, D), jnp.float32)
    params = init_params(kp, D, HID)

    out, attn = partially_spiking_decoder_block(x, params, num_heads=H)
    out = jax.block_until_ready(out)
    attn = jax.block_until_ready(attn)

    # Sanity check against a pure-JAX f32 reference of the same math.
    # Attention maps are exact (spikes are lossless in bf16, scale is a power of 2);
    # the output tolerance absorbs the bf16 weight/activation casts in the
    # projection/MLP matmuls (no LIF threshold sees bf16 rounding).
    ref_out, ref_attn = reference(x, params, H)
    np.testing.assert_allclose(np.asarray(attn), np.asarray(ref_attn),
                               rtol=1e-3, atol=1e-3)
    np.testing.assert_allclose(np.asarray(out), np.asarray(ref_out),
                               rtol=2e-2, atol=2e-2)

    print("KERNEL_OK")
</pallas_src>

<mosaic_0001>
module attributes {stable_mosaic.version = 11 : i64} {
  func.func @kernel(%arg0: i32, %arg1: i32, %arg2: memref<1x1x8x32xf32, #tpu.memory_space<vmem>>, %arg3: memref<32x96xf32, #tpu.memory_space<vmem>>, %arg4: memref<1x96xf32, #tpu.memory_space<vmem>>, %arg5: memref<32x32xbf16, #tpu.memory_space<vmem>>, %arg6: memref<1x32xf32, #tpu.memory_space<vmem>>, %arg7: memref<32x64xbf16, #tpu.memory_space<vmem>>, %arg8: memref<1x64xf32, #tpu.memory_space<vmem>>, %arg9: memref<64x32xbf16, #tpu.memory_space<vmem>>, %arg10: memref<1x32xf32, #tpu.memory_space<vmem>>, %arg11: memref<1x1x8x32xf32, #tpu.memory_space<vmem>>, %arg12: memref<1x1x2x8x8xf32, #tpu.memory_space<vmem>>, %arg13: memref<8x96xf32, #tpu.memory_space<vmem>>, %arg14: memref<8x32xf32, #tpu.memory_space<vmem>>) attributes {dimension_semantics = [#tpu.dimension_semantics<parallel>, #tpu.dimension_semantics<arbitrary>], iteration_bounds = array<i64: 2, 2>, scalar_prefetch = 0 : i64, scratch_operands = 2 : i64, tpu.core_type = #tpu.core_type<tc>, window_params = [{transform_indices = @transform_0, window_bounds = array<i64: 1, 1, 8, 32>}, {pipeline_mode = #tpu.pipeline_mode<synchronous>, transform_indices = @transform_1, window_bounds = array<i64: 32, 96>}, {pipeline_mode = #tpu.pipeline_mode<synchronous>, transform_indices = @transform_2, window_bounds = array<i64: 1, 96>}, {pipeline_mode = #tpu.pipeline_mode<synchronous>, transform_indices = @transform_3, window_bounds = array<i64: 32, 32>}, {pipeline_mode = #tpu.pipeline_mode<synchronous>, transform_indices = @transform_4, window_bounds = array<i64: 1, 32>}, {pipeline_mode = #tpu.pipeline_mode<synchronous>, transform_indices = @transform_5, window_bounds = array<i64: 32, 64>}, {pipeline_mode = #tpu.pipeline_mode<synchronous>, transform_indices = @transform_6, window_bounds = array<i64: 1, 64>}, {pipeline_mode = #tpu.pipeline_mode<synchronous>, transform_indices = @transform_7, window_bounds = array<i64: 64, 32>}, {pipeline_mode = #tpu.pipeline_mode<synchronous>, transform_indices = @transform_8, window_bounds = array<i64: 1, 32>}, {transform_indices = @transform_9, window_bounds = array<i64: 1, 1, 8, 32>}, {transform_indices = @transform_10, window_bounds = array<i64: 1, 1, 2, 8, 8>}]} {
    %c0_i32 = arith.constant 0 : i32
    %0 = arith.cmpi eq, %arg1, %c0_i32 : i32
    %1 = arith.extui %0 : i1 to i32
    %c0_i32_0 = arith.constant 0 : i32
    %2 = arith.cmpi ne, %1, %c0_i32_0 : i32
    scf.if %2 {
      %cst_57 = arith.constant 0.000000e+00 : f32
      %96 = vector.broadcast %cst_57 : f32 to vector<8x96xf32>
      %c0_58 = arith.constant 0 : index
      %c0_59 = arith.constant 0 : index
      %97 = vector.load %arg13[%c0_58, %c0_59] : memref<8x96xf32, #tpu.memory_space<vmem>>, vector<8x96xf32>
      tpu.vector_store %arg13[%c0_58, %c0_59], %96 {strides = array<i32>} : memref<8x96xf32, #tpu.memory_space<vmem>>, vector<8x96xf32>,
      %cst_60 = arith.constant 0.000000e+00 : f32
      %98 = vector.broadcast %cst_60 : f32 to vector<8x32xf32>
      %c0_61 = arith.constant 0 : index
      %c0_62 = arith.constant 0 : index
      %99 = vector.load %arg14[%c0_61, %c0_62] : memref<8x32xf32, #tpu.memory_space<vmem>>, vector<8x32xf32>
      tpu.vector_store %arg14[%c0_61, %c0_62], %98 {strides = array<i32>} : memref<8x32xf32, #tpu.memory_space<vmem>>, vector<8x32xf32>,
    } else {
    }
    %c0 = arith.constant 0 : index
    %c0_1 = arith.constant 0 : index
    %c0_2 = arith.constant 0 : index
    %c0_3 = arith.constant 0 : index
    %3 = vector.load %arg2[%c0, %c0_1, %c0_2, %c0_3] : memref<1x1x8x32xf32, #tpu.memory_space<vmem>>, vector<1x1x8x32xf32>
    %4 = vector.shape_cast %3 : vector<1x1x8x32xf32> to vector<8x32xf32>
    %c0_4 = arith.constant 0 : index
    %c0_5 = arith.constant 0 : index
    %5 = vector.load %arg3[%c0_4, %c0_5] : memref<32x96xf32, #tpu.memory_space<vmem>>, vector<32x96xf32>
    %cst = arith.constant dense<0.000000e+00> : vector<8x96xf32>
    %6 = tpu.matmul %4, %5, %cst {dimension_numbers = #tpu.dot_dimension_numbers<[1], [0], [0], [1], [0, 0, 1, 1], [], []>} : vector<8x32xf32>, vector<32x96xf32>, vector<8x96xf32> -> vector<8x96xf32>
    %c0_6 = arith.constant 0 : index
    %c0_7 = arith.constant 0 : index
    %7 = vector.load %arg4[%c0_6, %c0_7] : memref<1x96xf32, #tpu.memory_space<vmem>>, vector<1x96xf32>
    %8 = vector.broadcast %7 : vector<1x96xf32> to vector<8x96xf32>
    %9 = arith.addf %6, %8 : vector<8x96xf32>
    %c0_8 = arith.constant 0 : index
    %c0_9 = arith.constant 0 : index
    %10 = vector.load %arg13[%c0_8, %c0_9] : memref<8x96xf32, #tpu.memory_space<vmem>>, vector<8x96xf32>
    %c0_10 = arith.constant 0 : index
    %c0_11 = arith.constant 0 : index
    %11 = vector.load %arg13[%c0_10, %c0_11] : memref<8x96xf32, #tpu.memory_space<vmem>>, vector<8x96xf32>
    %12 = arith.subf %9, %11 : vector<8x96xf32>
    %cst_12 = arith.constant 5.000000e-01 : f32
    %13 = vector.broadcast %cst_12 : f32 to vector<8x96xf32>
    %14 = arith.mulf %12, %13 : vector<8x96xf32>
    %15 = arith.addf %10, %14 : vector<8x96xf32>
    %cst_13 = arith.constant 1.000000e+00 : f32
    %16 = vector.broadcast %cst_13 : f32 to vector<8x96xf32>
    %17 = arith.cmpf oge, %15, %16 : vector<8x96xf32>
    %18 = arith.extui %17 : vector<8x96xi1> to vector<8x96xi32>
    %19 = arith.sitofp %18 : vector<8x96xi32> to vector<8x96xf32>
    %cst_14 = arith.constant 1.000000e+00 : f32
    %20 = vector.broadcast %cst_14 : f32 to vector<8x96xf32>
    %21 = arith.subf %20, %19 : vector<8x96xf32>
    %22 = arith.mulf %15, %21 : vector<8x96xf32>
    %c0_15 = arith.constant 0 : index
    %c0_16 = arith.constant 0 : index
    %23 = vector.load %arg13[%c0_15, %c0_16] : memref<8x96xf32, #tpu.memory_space<vmem>>, vector<8x96xf32>
    tpu.vector_store %arg13[%c0_15, %c0_16], %22 {strides = array<i32>} : memref<8x96xf32, #tpu.memory_space<vmem>>, vector<8x96xf32>,
    %24 = vector.extract_strided_slice %19 {offsets = [0, 0], sizes = [8, 32], strides = [1, 1]} : vector<8x96xf32> to vector<8x32xf32>
    %cst_17 = arith.constant 2.500000e-01 : f32
    %25 = vector.broadcast %cst_17 : f32 to vector<8x32xf32>
    %26 = arith.mulf %24, %25 : vector<8x32xf32>
    %27 = vector.shape_cast %26 : vector<8x32xf32> to vector<8x2x16xf32>
    %28 = tpu.transpose %27, [1, 0, 2] : vector<8x2x16xf32> -> vector<2x8x16xf32>
    %29 = arith.truncf %28 : vector<2x8x16xf32> to vector<2x8x16xbf16>
    %30 = vector.extract_strided_slice %19 {offsets = [0, 32], sizes = [8, 32], strides = [1, 1]} : vector<8x96xf32> to vector<8x32xf32>
    %31 = vector.shape_cast %30 : vector<8x32xf32> to vector<8x2x16xf32>
    %32 = tpu.transpose %31, [1, 0, 2] : vector<8x2x16xf32> -> vector<2x8x16xf32>
    %33 = arith.truncf %32 : vector<2x8x16xf32> to vector<2x8x16xbf16>
    %34 = vector.extract_strided_slice %19 {offsets = [0, 64], sizes = [8, 32], strides = [1, 1]} : vector<8x96xf32> to vector<8x32xf32>
    %35 = vector.shape_cast %34 : vector<8x32xf32> to vector<8x2x16xf32>
    %36 = tpu.transpose %35, [1, 0, 2] : vector<8x2x16xf32> -> vector<2x8x16xf32>
    %37 = arith.truncf %36 : vector<2x8x16xf32> to vector<2x8x16xbf16>
    "tpu.trace_start"() <{level = 10 : i32, message = "hnd,hmd->hnm"}> : () -> ()
    %cst_18 = arith.constant dense<0.000000e+00> : vector<2x8x8xf32>
    %38 = tpu.matmul %29, %33, %cst_18 {dimension_numbers = #tpu.dot_dimension_numbers<[2], [2], [1], [1], [0, 0, 0, 1, 1, 1], [0], [0]>} : vector<2x8x16xbf16>, vector<2x8x16xbf16>, vector<2x8x8xf32> -> vector<2x8x8xf32>
    "tpu.trace_stop"() : () -> ()
    %c0_19 = arith.constant 0 : index
    %c0_20 = arith.constant 0 : index
    %c0_21 = arith.constant 0 : index
    %c0_22 = arith.constant 0 : index
    %c0_23 = arith.constant 0 : index
    %39 = vector.load %arg12[%c0_19, %c0_20, %c0_21, %c0_22, %c0_23] : memref<1x1x2x8x8xf32, #tpu.memory_space<vmem>>, vector<1x1x2x8x8xf32>
    %40 = vector.shape_cast %39 : vector<1x1x2x8x8xf32> to vector<2x8x8xf32>
    %41 = vector.shape_cast %38 : vector<2x8x8xf32> to vector<1x1x2x8x8xf32>
    tpu.vector_store %arg12[%c0_19, %c0_20, %c0_21, %c0_22, %c0_23], %41 {strides = array<i32>} : memref<1x1x2x8x8xf32, #tpu.memory_space<vmem>>, vector<1x1x2x8x8xf32>,
    %42 = arith.truncf %38 : vector<2x8x8xf32> to vector<2x8x8xbf16>
    "tpu.trace_start"() <{level = 10 : i32, message = "hnm,hmd->hnd"}> : () -> ()
    %cst_24 = arith.constant dense<0.000000e+00> : vector<2x8x16xf32>
    %43 = tpu.matmul %42, %37, %cst_24 {dimension_numbers = #tpu.dot_dimension_numbers<[2], [1], [1], [2], [0, 0, 0, 1, 1, 2], [0], [0]>} : vector<2x8x8xbf16>, vector<2x8x16xbf16>, vector<2x8x16xf32> -> vector<2x8x16xf32>
    "tpu.trace_stop"() : () -> ()
    %44 = tpu.transpose %43, [1, 0, 2] : vector<2x8x16xf32> -> vector<8x2x16xf32>
    %45 = vector.shape_cast %44 : vector<8x2x16xf32> to vector<8x32xf32>
    %c0_25 = arith.constant 0 : index
    %c0_26 = arith.constant 0 : index
    %46 = vector.load %arg14[%c0_25, %c0_26] : memref<8x32xf32, #tpu.memory_space<vmem>>, vector<8x32xf32>
    %c0_27 = arith.constant 0 : index
    %c0_28 = arith.constant 0 : index
    %47 = vector.load %arg14[%c0_27, %c0_28] : memref<8x32xf32, #tpu.memory_space<vmem>>, vector<8x32xf32>
    %48 = arith.subf %45, %47 : vector<8x32xf32>
    %cst_29 = arith.constant 5.000000e-01 : f32
    %49 = vector.broadcast %cst_29 : f32 to vector<8x32xf32>
    %50 = arith.mulf %48, %49 : vector<8x32xf32>
    %51 = arith.addf %46, %50 : vector<8x32xf32>
    %cst_30 = arith.constant 1.000000e+00 : f32
    %52 = vector.broadcast %cst_30 : f32 to vector<8x32xf32>
    %53 = arith.cmpf oge, %51, %52 : vector<8x32xf32>
    %54 = arith.extui %53 : vector<8x32xi1> to vector<8x32xi32>
    %55 = arith.sitofp %54 : vector<8x32xi32> to vector<8x32xf32>
    %cst_31 = arith.constant 1.000000e+00 : f32
    %56 = vector.broadcast %cst_31 : f32 to vector<8x32xf32>
    %57 = arith.subf %56, %55 : vector<8x32xf32>
    %58 = arith.mulf %51, %57 : vector<8x32xf32>
    %c0_32 = arith.constant 0 : index
    %c0_33 = arith.constant 0 : index
    %59 = vector.load %arg14[%c0_32, %c0_33] : memref<8x32xf32, #tpu.memory_space<vmem>>, vector<8x32xf32>
    tpu.vector_store %arg14[%c0_32, %c0_33], %58 {strides = array<i32>} : memref<8x32xf32, #tpu.memory_space<vmem>>, vector<8x32xf32>,
    %60 = arith.truncf %55 : vector<8x32xf32> to vector<8x32xbf16>
    %c0_34 = arith.constant 0 : index
    %c0_35 = arith.constant 0 : index
    %61 = vector.load %arg5[%c0_34, %c0_35] : memref<32x32xbf16, #tpu.memory_space<vmem>>, vector<32x32xbf16>
    %cst_36 = arith.constant dense<0.000000e+00> : vector<8x32xf32>
    %62 = tpu.matmul %60, %61, %cst_36 {dimension_numbers = #tpu.dot_dimension_numbers<[1], [0], [0], [1], [0, 0, 1, 1], [], []>} : vector<8x32xbf16>, vector<32x32xbf16>, vector<8x32xf32> -> vector<8x32xf32>
    %c0_37 = arith.constant 0 : index
    %c0_38 = arith.constant 0 : index
    %63 = vector.load %arg6[%c0_37, %c0_38] : memref<1x32xf32, #tpu.memory_space<vmem>>, vector<1x32xf32>
    %64 = vector.broadcast %63 : vector<1x32xf32> to vector<8x32xf32>
    %65 = arith.addf %62, %64 : vector<8x32xf32>
    %66 = arith.addf %4, %65 : vector<8x32xf32>
    %67 = arith.truncf %66 : vector<8x32xf32> to vector<8x32xbf16>
    %c0_39 = arith.constant 0 : index
    %c0_40 = arith.constant 0 : index
    %68 = vector.load %arg7[%c0_39, %c0_40] : memref<32x64xbf16, #tpu.memory_space<vmem>>, vector<32x64xbf16>
    %cst_41 = arith.constant dense<0.000000e+00> : vector<8x64xf32>
    %69 = tpu.matmul %67, %68, %cst_41 {dimension_numbers = #tpu.dot_dimension_numbers<[1], [0], [0], [1], [0, 0, 1, 1], [], []>} : vector<8x32xbf16>, vector<32x64xbf16>, vector<8x64xf32> -> vector<8x64xf32>
    %c0_42 = arith.constant 0 : index
    %c0_43 = arith.constant 0 : index
    %70 = vector.load %arg8[%c0_42, %c0_43] : memref<1x64xf32, #tpu.memory_space<vmem>>, vector<1x64xf32>
    %71 = vector.broadcast %70 : vector<1x64xf32> to vector<8x64xf32>
    %72 = arith.addf %69, %71 : vector<8x64xf32>
    %cst_44 = arith.constant 5.000000e-01 : f32
    %73 = vector.broadcast %cst_44 : f32 to vector<8x64xf32>
    %74 = arith.mulf %73, %72 : vector<8x64xf32>
    %cst_45 = arith.constant 4.471500e-02 : f32
    %75 = vector.broadcast %cst_45 : f32 to vector<8x64xf32>
    %76 = arith.mulf %75, %72 : vector<8x64xf32>
    %77 = arith.mulf %76, %72 : vector<8x64xf32>
    %78 = arith.mulf %77, %72 : vector<8x64xf32>
    %79 = arith.addf %72, %78 : vector<8x64xf32>
    %cst_46 = arith.constant 0.797884583 : f32
    %80 = vector.broadcast %cst_46 : f32 to vector<8x64xf32>
    %81 = arith.mulf %80, %79 : vector<8x64xf32>
    %82 = math.tanh %81 : vector<8x64xf32>
    %cst_47 = arith.constant 1.000000e+00 : f32
    %83 = vector.broadcast %cst_47 : f32 to vector<8x64xf32>
    %84 = arith.addf %83, %82 : vector<8x64xf32>
    %85 = arith.mulf %74, %84 : vector<8x64xf32>
    %86 = arith.truncf %85 : vector<8x64xf32> to vector<8x64xbf16>
    %c0_48 = arith.constant 0 : index
    %c0_49 = arith.constant 0 : index
    %87 = vector.load %arg9[%c0_48, %c0_49] : memref<64x32xbf16, #tpu.memory_space<vmem>>, vector<64x32xbf16>
    %cst_50 = arith.constant dense<0.000000e+00> : vector<8x32xf32>
    %88 = tpu.matmul %86, %87, %cst_50 {dimension_numbers = #tpu.dot_dimension_numbers<[1], [0], [0], [1], [0, 0, 1, 1], [], []>} : vector<8x64xbf16>, vector<64x32xbf16>, vector<8x32xf32> -> vector<8x32xf32>
    %c0_51 = arith.constant 0 : index
    %c0_52 = arith.constant 0 : index
    %89 = vector.load %arg10[%c0_51, %c0_52] : memref<1x32xf32, #tpu.memory_space<vmem>>, vector<1x32xf32>
    %90 = vector.broadcast %89 : vector<1x32xf32> to vector<8x32xf32>
    %91 = arith.addf %88, %90 : vector<8x32xf32>
    %92 = arith.addf %66, %91 : vector<8x32xf32>
    %c0_53 = arith.constant 0 : index
    %c0_54 = arith.constant 0 : index
    %c0_55 = arith.constant 0 : index
    %c0_56 = arith.constant 0 : index
    %93 = vector.load %arg11[%c0_53, %c0_54, %c0_55, %c0_56] : memref<1x1x8x32xf32, #tpu.memory_space<vmem>>, vector<1x1x8x32xf32>
    %94 = vector.shape_cast %93 : vector<1x1x8x32xf32> to vector<8x32xf32>
    %95 = vector.shape_cast %92 : vector<8x32xf32> to vector<1x1x8x32xf32>
    tpu.vector_store %arg11[%c0_53, %c0_54, %c0_55, %c0_56], %95 {strides = array<i32>} : memref<1x1x8x32xf32, #tpu.memory_space<vmem>>, vector<1x1x8x32xf32>,
    return
  }
  func.func @transform_0(%arg0: i32, %arg1: i32) -> (i32, i32, i32, i32) {
    %c0_i32 = arith.constant 0 : i32
    %c0_i32_0 = arith.constant 0 : i32
    %c0_i32_1 = arith.constant 0 : i32
    return %arg1, %arg0, %c0_i32, %c0_i32_0 : i32, i32, i32, i32
  }
  func.func @transform_1(%arg0: i32, %arg1: i32) -> (i32, i32) {
    %c0_i32 = arith.constant 0 : i32
    %c0_i32_0 = arith.constant 0 : i32
    %c0_i32_1 = arith.constant 0 : i32
    return %c0_i32, %c0_i32_0 : i32, i32
  }
  func.func @transform_2(%arg0: i32, %arg1: i32) -> (i32, i32) {
    %c0_i32 = arith.constant 0 : i32
    %c0_i32_0 = arith.constant 0 : i32
    %c0_i32_1 = arith.constant 0 : i32
    return %c0_i32, %c0_i32_0 : i32, i32
  }
  func.func @transform_3(%arg0: i32, %arg1: i32) -> (i32, i32) {
    %c0_i32 = arith.constant 0 : i32
    %c0_i32_0 = arith.constant 0 : i32
    %c0_i32_1 = arith.constant 0 : i32
    return %c0_i32, %c0_i32_0 : i32, i32
  }
  func.func @transform_4(%arg0: i32, %arg1: i32) -> (i32, i32) {
    %c0_i32 = arith.constant 0 : i32
    %c0_i32_0 = arith.constant 0 : i32
    %c0_i32_1 = arith.constant 0 : i32
    return %c0_i32, %c0_i32_0 : i32, i32
  }
  func.func @transform_5(%arg0: i32, %arg1: i32) -> (i32, i32) {
    %c0_i32 = arith.constant 0 : i32
    %c0_i32_0 = arith.constant 0 : i32
    %c0_i32_1 = arith.constant 0 : i32
    return %c0_i32, %c0_i32_0 : i32, i32
  }
  func.func @transform_6(%arg0: i32, %arg1: i32) -> (i32, i32) {
    %c0_i32 = arith.constant 0 : i32
    %c0_i32_0 = arith.constant 0 : i32
    %c0_i32_1 = arith.constant 0 : i32
    return %c0_i32, %c0_i32_0 : i32, i32
  }
  func.func @transform_7(%arg0: i32, %arg1: i32) -> (i32, i32) {
    %c0_i32 = arith.constant 0 : i32
    %c0_i32_0 = arith.constant 0 : i32
    %c0_i32_1 = arith.constant 0 : i32
    return %c0_i32, %c0_i32_0 : i32, i32
  }
  func.func @transform_8(%arg0: i32, %arg1: i32) -> (i32, i32) {
    %c0_i32 = arith.constant 0 : i32
    %c0_i32_0 = arith.constant 0 : i32
    %c0_i32_1 = arith.constant 0 : i32
    return %c0_i32, %c0_i32_0 : i32, i32
  }
  func.func @transform_9(%arg0: i32, %arg1: i32) -> (i32, i32, i32, i32) {
    %c0_i32 = arith.constant 0 : i32
    %c0_i32_0 = arith.constant 0 : i32
    %c0_i32_1 = arith.constant 0 : i32
    return %arg1, %arg0, %c0_i32, %c0_i32_0 : i32, i32, i32, i32
  }
  func.func @transform_10(%arg0: i32, %arg1: i32) -> (i32, i32, i32, i32, i32) {
    %c0_i32 = arith.constant 0 : i32
    %c0_i32_0 = arith.constant 0 : i32
    %c0_i32_1 = arith.constant 0 : i32
    %c0_i32_2 = arith.constant 0 : i32
    return %arg1, %arg0, %c0_i32, %c0_i32_0, %c0_i32_1 : i32, i32, i32, i32, i32
  }
}

</mosaic_0001>

<llo_original>
// kernel: tpu_custom_call.1
$region0: #{tpu_custom_call.1}
  #allocation0 [shape = 'u32[]', space=smem, size = 0x4, offset = 0x4, fixed_abs, tag = 'smem constant byte address 0x4 - core index']
  #allocation1 [shape = 'u32[144,128]{1,0:T(1,128)}', space=vmem, size = 0x12000, scoped, tag = 'internal scratch']
  #allocation2 [shape = 'f32[8,96]{1,0:T(8,128)}', space=vmem, size = 0x1000, scoped, tag = 'scratch operand']
  #allocation3 [shape = 'f32[8,32]{1,0:T(8,128)}', space=vmem, size = 0x1000, scoped, tag = 'scratch operand']
  %s0 = inlined_call_operand.vmem [shape: f32[2,2,8,32], index: 0, kind: input, shape index: {}]
  %s1 = inlined_call_operand.hbm [shape: f32[32,96], index: 1, kind: input, shape index: {}]
  %s2 = inlined_call_operand.vmem [shape: f32[1,96], index: 2, kind: input, shape index: {}]
  %s3 = inlined_call_operand.vmem [shape: bf16[32,32], index: 3, kind: input, shape index: {}]
  %s4 = inlined_call_operand.vmem [shape: f32[1,32], index: 4, kind: input, shape index: {}]
  %s5 = inlined_call_operand.hbm [shape: bf16[32,64], index: 5, kind: input, shape index: {}]
  %s6 = inlined_call_operand.vmem [shape: f32[1,64], index: 6, kind: input, shape index: {}]
  %s7 = inlined_call_operand.vmem [shape: bf16[64,32], index: 7, kind: input, shape index: {}]
  %s8 = inlined_call_operand.vmem [shape: f32[1,32], index: 8, kind: input, shape index: {}]
  %s9 = inlined_call_operand.hbm [shape: f32[2,2,8,32], index: 9, kind: output, shape index: {0}]
  %s10 = inlined_call_operand.hbm [shape: f32[2,2,2,8,8], index: 10, kind: output, shape index: {1}]
  %11 = xla_tuple %s9, %s10
  %s12 = sld [smem:[#allocation0]]
  $region89: #{tpu_custom_call.1} parent=0
    _
  %s14 = ssub.s32 1, %s12
  %s15 = scalar_select 0, %s14, %s12
  $region1: #{tpu_custom_call.1} parent=0
    #allocation4 [shape = 'u8[16384]{0}', space=vmem, size = 0x4000, scoped, tag = 'input window, operand 1, single buffered']
    #allocation5 [shape = 's32[2]{0}', space=sflag, size = 0x8, scoped, tag = 'scoped memory for tpu_custom_call.1']
    #allocation6 [shape = 's32[2]{0}', space=sflag, size = 0x8, scoped, tag = 'scoped memory for tpu_custom_call.1']
    #allocation7 [shape = 'u8[8192]{0}', space=vmem, size = 0x2000, scoped, tag = 'input window, operand 5, single buffered']
    #allocation8 [shape = 's32[1]{0}', space=sflag, size = 0x4, scoped, tag = 'scoped memory for tpu_custom_call.1']
    #allocation9 [shape = 'u8[8192]{0}', space=vmem, size = 0x2000, scoped, tag = 'output window, operand 0']
    #allocation10 [shape = 'u8[16384]{0}', space=vmem, size = 0x4000, scoped, tag = 'output window, operand 1']
    #allocation11 [shape = 's32[2]{0}', space=sflag, size = 0x8, scoped, tag = 'scoped memory for tpu_custom_call.1']
    %16 = vsyncpa [#allocation5], 0
    %17 = vsyncpa [#allocation8], 0
    %18 = vsyncpa [#allocation6], 0
    %s19 = scalar_lea.sflag [#allocation6], 1
    %20 = vsyncpa %s19, 0
    %21 = vsyncpa [#allocation11], 0
    %s22 = scalar_lea.sflag [#allocation11], 1
    %23 = vsyncpa %s22, 0
    loop: start=0, step=1, limit=6
    $region2: #{tpu_custom_call.1} parent=1 // loop_pre_header
      _
    $region3: #{tpu_custom_call.1} parent=1 // loop_header
      %s25 = sphi 0, %s29
      %p26 = scmp.ge.s32.totalorder %s25, 6
      %s32 = sphi 0, %s44
      %s33 = sphi 0, %s40
      %s34 = sphi 0, %s32
      %s35 = sphi 0, %s33
      %s36 = sphi 0, %s34
      %s37 = sphi 0, %s35
      %s49 = sphi 0, %s51
      %s52 = sphi 0, %s49
      %s53 = sphi 0, %s52
      %s69 = sphi 0, %s53
      %s73 = sphi 0, %s73
      %s75 = sphi 0, %s73
      %s76 = sphi 0, %s75
      %s90 = sphi 0, %s76
      %s94 = sphi 0, %s94
      %s96 = sphi 0, %s94
      %s97 = sphi 0, %s96
      %s111 = sphi 0, %s97
      %s115 = sphi 0, %s115
      %s117 = sphi 0, %s115
      %s118 = sphi 0, %s117
      %s132 = sphi 0, %s118
      %s136 = sphi 0, %s136
      %s138 = sphi 0, %s136
      %s139 = sphi 0, %s138
      %s153 = sphi 0, %s139
      %s157 = sphi 0, %s157
      %s159 = sphi 0, %s157
      %s160 = sphi 0, %s159
      %s174 = sphi 0, %s160
      %s178 = sphi 0, %s178
      %s180 = sphi 0, %s178
      %s181 = sphi 0, %s180
      %s195 = sphi 0, %s181
      %s199 = sphi 0, %s199
      %s201 = sphi 0, %s199
      %s202 = sphi 0, %s201
      %s216 = sphi 0, %s202
      %s220 = sphi 0, %s220
      %s222 = sphi 0, %s220
      %s223 = sphi 0, %s222
      %s237 = sphi 0, %s223
      %s245 = sphi 0, %s247
      %s248 = sphi 0, %s245
      %s249 = sphi 0, %s248
      %s265 = sphi 0, %s249
      %s273 = sphi 0, %s275
      %s276 = sphi 0, %s273
      %s277 = sphi 0, %s276
      %s293 = sphi 0, %s277
    $region4: #{tpu_custom_call.1} parent=1 // loop_header_branch
      %28 = sbr.rel (%p26) target = $region8
    $region5: #{tpu_custom_call.1} parent=1 // loop_body
      %s30 = ssub.s32 %s25, 1
      %s31 = ssub.s32 %s25, 2
      %s38 = sadd.s32 1, %s33
      %p39 = scmp.ge.s32.totalorder %s38, 2
      %s40 = scalar_select %p39, 0, %s38
      %s41 = sadd.s32 1, %s32
      %s42 = scalar_select %p39, %s41, %s32
      %p43 = scmp.ge.s32.totalorder %s42, 2
      %s44 = scalar_select %p43, 0, %s42
      %s45 = ssub.s32 %s33, %s40
      %s46 = ssub.s32 %s32, %s44
      %s47 = sor.u32 %s45, %s46
      %p48 = scmp.eq.s32.totalorder %s47, 0
      %s50 = sadd.s32 %s49, 1
      %s51 = scalar_select %p48, %s49, %s50
      %p54 = pneg %p48
      %p55 = scmp.eq.s32.totalorder %s25, 3
      %p56 = por %p54, %p55
      %p57 = scmp.ne.s32.totalorder %s49, %s52
      %p58 = scmp.eq.s32.totalorder %s25, 0
      %p59 = por %p57, %p58
      %p60 = scmp.ne.s32.totalorder %s49, %s52
      %p61 = scmp.eq.s32.totalorder %s30, 3
      %p62 = por %p60, %p61
      %p63 = scmp.ne.s32.totalorder %s52, %s53
      %p64 = scmp.eq.s32.totalorder %s30, 0
      %p65 = por %p63, %p64
      %p66 = scmp.ne.s32.totalorder %s52, %s53
      %p67 = scmp.eq.s32.totalorder %s31, 3
      %p68 = por %p66, %p67
      %p70 = scmp.ne.s32.totalorder %s53, %s69
      %p71 = scmp.eq.s32.totalorder %s31, 0
      %p72 = por %p70, %p71
      %s74 = sadd.s32 %s73, 1
      %p77 = scmp.eq.s32.totalorder %s25, 3
      %p78 = scmp.ne.s32.totalorder %s73, %s75
      %p79 = scmp.eq.s32.totalorder %s25, 0
      %p80 = por %p78, %p79
      %p81 = scmp.ne.s32.totalorder %s73, %s75
      %p82 = scmp.eq.s32.totalorder %s30, 3
      %p83 = por %p81, %p82
      %p84 = scmp.ne.s32.totalorder %s75, %s76
      %p85 = scmp.eq.s32.totalorder %s30, 0
      %p86 = por %p84, %p85
      %p87 = scmp.ne.s32.totalorder %s75, %s76
      %p88 = scmp.eq.s32.totalorder %s31, 3
      %p89 = por %p87, %p88
      %p91 = scmp.ne.s32.totalorder %s76, %s90
      %p92 = scmp.eq.s32.totalorder %s31, 0
      %p93 = por %p91, %p92
      %s95 = sadd.s32 %s94, 1
      %p98 = scmp.eq.s32.totalorder %s25, 3
      %p99 = scmp.ne.s32.totalorder %s94, %s96
      %p100 = scmp.eq.s32.totalorder %s25, 0
      %p101 = por %p99, %p100
      %p102 = scmp.ne.s32.totalorder %s94, %s96
      %p103 = scmp.eq.s32.totalorder %s30, 3
      %p104 = por %p102, %p103
      %p105 = scmp.ne.s32.totalorder %s96, %s97
      %p106 = scmp.eq.s32.totalorder %s30, 0
      %p107 = por %p105, %p106
      %p108 = scmp.ne.s32.totalorder %s96, %s97
      %p109 = scmp.eq.s32.totalorder %s31, 3
      %p110 = por %p108, %p109
      %p112 = scmp.ne.s32.totalorder %s97, %s111
      %p113 = scmp.eq.s32.totalorder %s31, 0
      %p114 = por %p112, %p113
      %s116 = sadd.s32 %s115, 1
      %p119 = scmp.eq.s32.totalorder %s25, 3
      %p120 = scmp.ne.s32.totalorder %s115, %s117
      %p121 = scmp.eq.s32.totalorder %s25, 0
      %p122 = por %p120, %p121
      %p123 = scmp.ne.s32.totalorder %s115, %s117
      %p124 = scmp.eq.s32.totalorder %s30, 3
      %p125 = por %p123, %p124
      %p126 = scmp.ne.s32.totalorder %s117, %s118
      %p127 = scmp.eq.s32.totalorder %s30, 0
      %p128 = por %p126, %p127
      %p129 = scmp.ne.s32.totalorder %s117, %s118
      %p130 = scmp.eq.s32.totalorder %s31, 3
      %p131 = por %p129, %p130
      %p133 = scmp.ne.s32.totalorder %s118, %s132
      %p134 = scmp.eq.s32.totalorder %s31, 0
      %p135 = por %p133, %p134
      %s137 = sadd.s32 %s136, 1
      %p140 = scmp.eq.s32.totalorder %s25, 3
      %p141 = scmp.ne.s32.totalorder %s136, %s138
      %p142 = scmp.eq.s32.totalorder %s25, 0
      %p143 = por %p141, %p142
      %p144 = scmp.ne.s32.totalorder %s136, %s138
      %p145 = scmp.eq.s32.totalorder %s30, 3
      %p146 = por %p144, %p145
      %p147 = scmp.ne.s32.totalorder %s138, %s139
      %p148 = scmp.eq.s32.totalorder %s30, 0
      %p149 = por %p147, %p148
      %p150 = scmp.ne.s32.totalorder %s138, %s139
      %p151 = scmp.eq.s32.totalorder %s31, 3
      %p152 = por %p150, %p151
      %p154 = scmp.ne.s32.totalorder %s139, %s153
      %p155 = scmp.eq.s32.totalorder %s31, 0
      %p156 = por %p154, %p155
      %s158 = sadd.s32 %s157, 1
      %p161 = scmp.eq.s32.totalorder %s25, 3
      %p162 = scmp.ne.s32.totalorder %s157, %s159
      %p163 = scmp.eq.s32.totalorder %s25, 0
      %p164 = por %p162, %p163
      %p165 = scmp.ne.s32.totalorder %s157, %s159
      %p166 = scmp.eq.s32.totalorder %s30, 3
      %p167 = por %p165, %p166
      %p168 = scmp.ne.s32.totalorder %s159, %s160
      %p169 = scmp.eq.s32.totalorder %s30, 0
      %p170 = por %p168, %p169
      %p171 = scmp.ne.s32.totalorder %s159, %s160
      %p172 = scmp.eq.s32.totalorder %s31, 3
      %p173 = por %p171, %p172
      %p175 = scmp.ne.s32.totalorder %s160, %s174
      %p176 = scmp.eq.s32.totalorder %s31, 0
      %p177 = por %p175, %p176
      %s179 = sadd.s32 %s178, 1
      %p182 = scmp.eq.s32.totalorder %s25, 3
      %p183 = scmp.ne.s32.totalorder %s178, %s180
      %p184 = scmp.eq.s32.totalorder %s25, 0
      %p185 = por %p183, %p184
      %p186 = scmp.ne.s32.totalorder %s178, %s180
      %p187 = scmp.eq.s32.totalorder %s30, 3
      %p188 = por %p186, %p187
      %p189 = scmp.ne.s32.totalorder %s180, %s181
      %p190 = scmp.eq.s32.totalorder %s30, 0
      %p191 = por %p189, %p190
      %p192 = scmp.ne.s32.totalorder %s180, %s181
      %p193 = scmp.eq.s32.totalorder %s31, 3
      %p194 = por %p192, %p193
      %p196 = scmp.ne.s32.totalorder %s181, %s195
      %p197 = scmp.eq.s32.totalorder %s31, 0
      %p198 = por %p196, %p197
      %s200 = sadd.s32 %s199, 1
      %p203 = scmp.eq.s32.totalorder %s25, 3
      %p204 = scmp.ne.s32.totalorder %s199, %s201
      %p205 = scmp.eq.s32.totalorder %s25, 0
      %p206 = por %p204, %p205
      %p207 = scmp.ne.s32.totalorder %s199, %s201
      %p208 = scmp.eq.s32.totalorder %s30, 3
      %p209 = por %p207, %p208
      %p210 = scmp.ne.s32.totalorder %s201, %s202
      %p211 = scmp.eq.s32.totalorder %s30, 0
      %p212 = por %p210, %p211
      %p213 = scmp.ne.s32.totalorder %s201, %s202
      %p214 = scmp.eq.s32.totalorder %s31, 3
      %p215 = por %p213, %p214
      %p217 = scmp.ne.s32.totalorder %s202, %s216
      %p218 = scmp.eq.s32.totalorder %s31, 0
      %p219 = por %p217, %p218
      %s221 = sadd.s32 %s220, 1
      %p224 = scmp.eq.s32.totalorder %s25, 3
      %p225 = scmp.ne.s32.totalorder %s220, %s222
      %p226 = scmp.eq.s32.totalorder %s25, 0
      %p227 = por %p225, %p226
      %p228 = scmp.ne.s32.totalorder %s220, %s222
      %p229 = scmp.eq.s32.totalorder %s30, 3
      %p230 = por %p228, %p229
      %p231 = scmp.ne.s32.totalorder %s222, %s223
      %p232 = scmp.eq.s32.totalorder %s30, 0
      %p233 = por %p231, %p232
      %p234 = scmp.ne.s32.totalorder %s222, %s223
      %p235 = scmp.eq.s32.totalorder %s31, 3
      %p236 = por %p234, %p235
      %p238 = scmp.ne.s32.totalorder %s223, %s237
      %p239 = scmp.eq.s32.totalorder %s31, 0
      %p240 = por %p238, %p239
      %s241 = ssub.s32 %s33, %s40
      %s242 = ssub.s32 %s32, %s44
      %s243 = sor.u32 %s241, %s242
      %p244 = scmp.eq.s32.totalorder %s243, 0
      %s246 = sadd.s32 %s245, 1
      %s247 = scalar_select %p244, %s245, %s246
      %p250 = pneg %p244
      %p251 = scmp.eq.s32.totalorder %s25, 3
      %p252 = por %p250, %p251
      %p253 = scmp.ne.s32.totalorder %s245, %s248
      %p254 = scmp.eq.s32.totalorder %s25, 0
      %p255 = por %p253, %p254
      %p256 = scmp.ne.s32.totalorder %s245, %s248
      %p257 = scmp.eq.s32.totalorder %s30, 3
      %p258 = por %p256, %p257
      %p259 = scmp.ne.s32.totalorder %s248, %s249
      %p260 = scmp.eq.s32.totalorder %s30, 0
      %p261 = por %p259, %p260
      %p262 = scmp.ne.s32.totalorder %s248, %s249
      %p263 = scmp.eq.s32.totalorder %s31, 3
      %p264 = por %p262, %p263
      %p266 = scmp.ne.s32.totalorder %s249, %s265
      %p267 = scmp.eq.s32.totalorder %s31, 0
      %p268 = por %p266, %p267
      %s269 = ssub.s32 %s33, %s40
      %s270 = ssub.s32 %s32, %s44
      %s271 = sor.u32 %s269, %s270
      %p272 = scmp.eq.s32.totalorder %s271, 0
      %s274 = sadd.s32 %s273, 1
      %s275 = scalar_select %p272, %s273, %s274
      %p278 = pneg %p272
      %p279 = scmp.eq.s32.totalorder %s25, 3
      %p280 = por %p278, %p279
      %p281 = scmp.ne.s32.totalorder %s273, %s276
      %p282 = scmp.eq.s32.totalorder %s25, 0
      %p283 = por %p281, %p282
      %p284 = scmp.ne.s32.totalorder %s273, %s276
      %p285 = scmp.eq.s32.totalorder %s30, 3
      %p286 = por %p284, %p285
      %p287 = scmp.ne.s32.totalorder %s276, %s277
      %p288 = scmp.eq.s32.totalorder %s30, 0
      %p289 = por %p287, %p288
      %p290 = scmp.ne.s32.totalorder %s276, %s277
      %p291 = scmp.eq.s32.totalorder %s31, 3
      %p292 = por %p290, %p291
      %p294 = scmp.ne.s32.totalorder %s277, %s293
      %p295 = scmp.eq.s32.totalorder %s31, 0
      %p296 = por %p294, %p295
      %p297 = scmp.le.s32.totalorder 1, %s25
      %p298 = scmp.lt.s32.totalorder %s25, 5
      %p299 = pnand %p297, %p298
      %p300 = pneg %p299
      // Predicated region
      $region9: #{tpu_custom_call.1} parent=5 // pred_check
        _
      $region10: #{tpu_custom_call.1} parent=5 // pred_check_branch
        %302 = sbr.rel (%p299) target = $region12
      $region11: #{tpu_custom_call.1} parent=5 // pred_region
        %s303 = ssub.s32 %s25, 1
        // Predicated region
        $region13: #{tpu_custom_call.1} parent=11 // pred_check
          %p304 = pneg %p86
        $region14: #{tpu_custom_call.1} parent=11 // pred_check_branch
          %306 = sbr.rel (%p304) target = $region16
        $region15: #{tpu_custom_call.1} parent=11 // pred_region
          %s308 = ssub.s32 512, 512
          %309 = vsyncadd [#allocation5], %s308
          %s310 = sshll.u32 [#allocation4], 4
          %s311 = int_to_ptr.vmem [resolvable:$true] %s310
          %316 = dma.hbm_to_vmem [thread:$0]  %s1, 512, %s311, [#allocation5], 128, 128, 8
        $region16: #{tpu_custom_call.1} parent=11 // pred_fallthru
          _
        // Predicated region
        $region17: #{tpu_custom_call.1} parent=11 // pred_check
          %p317 = pneg %p107
        $region18: #{tpu_custom_call.1} parent=11 // pred_check_branch
          %319 = sbr.rel (%p317) target = $region20
        $region19: #{tpu_custom_call.1} parent=11 // pred_region
          _
        $region20: #{tpu_custom_call.1} parent=11 // pred_fallthru
          _
        // Predicated region
        $region21: #{tpu_custom_call.1} parent=11 // pred_check
          %p320 = pneg %p128
        $region22: #{tpu_custom_call.1} parent=11 // pred_check_branch
          %322 = sbr.rel (%p320) target = $region24
        $region23: #{tpu_custom_call.1} parent=11 // pred_region
          _
        $region24: #{tpu_custom_call.1} parent=11 // pred_fallthru
          _
        // Predicated region
        $region25: #{tpu_custom_call.1} parent=11 // pred_check
          %p323 = pneg %p149
        $region26: #{tpu_custom_call.1} parent=11 // pred_check_branch
          %325 = sbr.rel (%p323) target = $region28
        $region27: #{tpu_custom_call.1} parent=11 // pred_region
          _
        $region28: #{tpu_custom_call.1} parent=11 // pred_fallthru
          _
        // Predicated region
        $region29: #{tpu_custom_call.1} parent=11 // pred_check
          %p326 = pneg %p170
        $region30: #{tpu_custom_call.1} parent=11 // pred_check_branch
          %328 = sbr.rel (%p326) target = $region32
        $region31: #{tpu_custom_call.1} parent=11 // pred_region
          %s330 = ssub.s32 256, 256
          %331 = vsyncadd [#allocation8], %s330
          %s332 = sshll.u32 [#allocation7], 4
          %s333 = int_to_ptr.vmem [resolvable:$true] %s332
          %338 = dma.hbm_to_vmem [thread:$0]  %s5, 256, %s333, [#allocation8], 64, 64, 4
        $region32: #{tpu_custom_call.1} parent=11 // pred_fallthru
          _
        // Predicated region
        $region33: #{tpu_custom_call.1} parent=11 // pred_check
          %p339 = pneg %p191
        $region34: #{tpu_custom_call.1} parent=11 // pred_check_branch
          %341 = sbr.rel (%p339) target = $region36
        $region35: #{tpu_custom_call.1} parent=11 // pred_region
          _
        $region36: #{tpu_custom_call.1} parent=11 // pred_fallthru
          _
        // Predicated region
        $region37: #{tpu_custom_call.1} parent=11 // pred_check
          %p342 = pneg %p212
        $region38: #{tpu_custom_call.1} parent=11 // pred_check_branch
          %344 = sbr.rel (%p342) target = $region40
        $region39: #{tpu_custom_call.1} parent=11 // pred_region
          _
        $region40: #{tpu_custom_call.1} parent=11 // pred_fallthru
          _
        // Predicated region
        $region41: #{tpu_custom_call.1} parent=11 // pred_check
          %p345 = pneg %p233
        $region42: #{tpu_custom_call.1} parent=11 // pred_check_branch
          %347 = sbr.rel (%p345) target = $region44
        $region43: #{tpu_custom_call.1} parent=11 // pred_region
          _
        $region44: #{tpu_custom_call.1} parent=11 // pred_fallthru
          _
      $region12: #{tpu_custom_call.1} parent=5 // pred_fallthru
        _
      %p348 = scmp.lt.s32.totalorder %s25, 4
      // Predicated region
      $region45: #{tpu_custom_call.1} parent=5 // pred_check
        %p349 = pneg %p348
      $region46: #{tpu_custom_call.1} parent=5 // pred_check_branch
        %351 = sbr.rel (%p349) target = $region48
      $region47: #{tpu_custom_call.1} parent=5 // pred_region
        // Predicated region
        $region49: #{tpu_custom_call.1} parent=47 // pred_check
          %p352 = pneg %p59
        $region50: #{tpu_custom_call.1} parent=47 // pred_check_branch
          %354 = sbr.rel (%p352) target = $region52
        $region51: #{tpu_custom_call.1} parent=47 // pred_region
          %p355 = scmp.lt.s32.totalorder %s33, 1
          %s356 = scalar_select %p355, %s33, 1
          %p357 = scmp.lt.s32.totalorder %s32, 1
          %s358 = scalar_select %p357, %s32, 1
          %s359 = smul.addr %s356, 2
          %s360 = sadd.s32 %s358, %s359
          %s361 = smul.addr %s360, 8
          %s362 = scalar_lea.vmem %s0, %s361
        $region52: #{tpu_custom_call.1} parent=47 // pred_fallthru
          _
      $region48: #{tpu_custom_call.1} parent=5 // pred_fallthru
        _
      %p363 = scmp.le.s32.totalorder 1, %s25
      %p364 = scmp.lt.s32.totalorder %s25, 5
      %p365 = pnand %p363, %p364
      %p366 = pneg %p365
      // Predicated region
      $region53: #{tpu_custom_call.1} parent=5 // pred_check
        _
      $region54: #{tpu_custom_call.1} parent=5 // pred_check_branch
        %368 = sbr.rel (%p365) target = $region56
      $region55: #{tpu_custom_call.1} parent=5 // pred_region
        %s369 = ssub.s32 %s25, 1
        // Predicated region
        $region57: #{tpu_custom_call.1} parent=55 // pred_check
          %p370 = pneg %p86
        $region58: #{tpu_custom_call.1} parent=55 // pred_check_branch
          %372 = sbr.rel (%p370) target = $region60
        $region59: #{tpu_custom_call.1} parent=55 // pred_region
          %373 = dma.done [#allocation5], 512
        $region60: #{tpu_custom_call.1} parent=55 // pred_fallthru
          _
        // Predicated region
        $region61: #{tpu_custom_call.1} parent=55 // pred_check
          %p374 = pneg %p170
        $region62: #{tpu_custom_call.1} parent=55 // pred_check_branch
          %376 = sbr.rel (%p374) target = $region64
        $region63: #{tpu_custom_call.1} parent=55 // pred_region
          %377 = dma.done [#allocation8], 256
        $region64: #{tpu_custom_call.1} parent=55 // pred_fallthru
          _
        %p378 = scmp.lt.s32.totalorder %s35, 1
        %s379 = scalar_select %p378, %s35, 1
        %p380 = scmp.lt.s32.totalorder %s34, 1
        %s381 = scalar_select %p380, %s34, 1
        %s382 = smul.addr %s379, 2
        %s383 = sadd.s32 %s381, %s382
        %s384 = smul.addr %s383, 8
        %s385 = scalar_lea.vmem %s0, %s384
        %p386 = pneg %p65
        %p387 = pneg %p62
        %p388 = pneg %p86
        %p389 = pneg %p83
        %p390 = pneg %p107
        %p391 = pneg %p104
        %p392 = pneg %p128
        %p393 = pneg %p125
        %p394 = pneg %p149
        %p395 = pneg %p146
        %p396 = pneg %p170
        %p397 = pneg %p167
        %p398 = pneg %p191
        %p399 = pneg %p188
        %p400 = pneg %p212
        %p401 = pneg %p209
        %p402 = pneg %p233
        %p403 = pneg %p230
        %p404 = pneg %p261
        %p405 = pneg %p258
        %s406 = sand.u32 %s248, 1
        %s407 = scalar_lea.sflag [#allocation6], %s406
        %s408 = sand.u32 %s248, 1
        %s409 = smul.addr %s408, 8
        %s410 = scalar_lea.vmem [#allocation9], %s409
        %p411 = pneg %p289
        %p412 = pneg %p286
        %s413 = sand.u32 %s276, 1
        %s414 = scalar_lea.sflag [#allocation11], %s413
        %s415 = sand.u32 %s276, 1
        %s416 = smul.addr %s415, 16
        %s417 = scalar_lea.vmem [#allocation10], %s416
        %p418 = scmp.lt.s32.totalorder %s35, 1
        %s419 = scalar_select %p418, %s35, 1
        %p420 = scmp.lt.s32.totalorder %s34, 1
        %s421 = scalar_select %p420, %s34, 1
        %s422 = smul.addr %s419, 2
        %s423 = sadd.s32 %s421, %s422
        %s424 = smul.addr %s423, 8
        %s425 = scalar_lea.vmem %s0, %s424
        %p427 = scmp.eq.s32.totalorder %s35, 0
        // Predicated region
        $region65: #{tpu_custom_call.1} parent=55 // pred_check
          %p428 = pneg %p427
        $region66: #{tpu_custom_call.1} parent=55 // pred_check_branch
          %430 = sbr.rel (%p428) target = $region68
        $region67: #{tpu_custom_call.1} parent=55 // pred_region
          %vm431 = vcmask 785408
          %432 = vst.msk [vmem:[#allocation2] sm:$0xff] %vm431, 0.0
          %vm433 = vcmask 261120
          %434 = vst.msk [vmem:[#allocation3] sm:$0xff] %vm433, 0.0
        $region68: #{tpu_custom_call.1} parent=55 // pred_fallthru
          _
        %v435 = vld [vmem:[%s425] sm:$0xff]
        %v436 = vld [vmem:[#allocation4] sm:$0xff]
        %v437 = vld [vmem:[#allocation4 + $0x8] sm:$0xff]
        %v438 = vld [vmem:[#allocation4 + $0x10] sm:$0xff]
        %v439 = vld [vmem:[#allocation4 + $0x18] sm:$0xff]
        %v440 = vld [vmem:[%s2] sm:$0x1]
        %v442 = vlaneseq
        %v443 = vshrl.u32 %v442, 7
        %v444 = vsub.s32 0, %v443
        %v445 = vrot.slane %v440, %v444
        %vm447 = vcmask 261120
        %v449 = vsel %vm447, %v435, 0
        %451 = vmatprep.subr.mxu0 0.0
        %452 = vmatpush1.msra.mxu0 %v436
        %453 = vmatprep.subr.mxu0 0.0
        %454 = vmatpush1.msra.mxu0 %v437
        %455 = vmatprep.subr.mxu0 0.0
        %456 = vmatpush1.msra.mxu0 %v438
        %457 = vmatprep.subr.mxu0 0.0
        %458 = vmatpush1.msra.mxu0 %v439
        %459 = vmatprep.subr.mxu0 0.0
        %460 = vmatpush1.msra.mxu0 0.0
        %461 = vmatprep.subr.mxu0 0.0
        %462 = vmatpush1.msra.mxu0 0.0
        %463 = vmatprep.subr.mxu0 0.0
        %464 = vmatpush1.msra.mxu0 0.0
        %465 = vmatprep.subr.mxu0 0.0
        %466 = vmatpush1.msra.mxu0 0.0
        %467 = vmatprep.subr.mxu0 0.0
        %468 = vmatpush1.msra.mxu0 0.0
        %469 = vmatprep.subr.mxu0 0.0
        %470 = vmatpush1.msra.mxu0 0.0
        %471 = vmatprep.subr.mxu0 0.0
        %472 = vmatpush1.msra.mxu0 0.0
        %473 = vmatprep.subr.mxu0 0.0
        %474 = vmatpush1.msra.mxu0 0.0
        %475 = vmatprep.subr.mxu0 0.0
        %476 = vmatpush1.msra.mxu0 0.0
        %477 = vmatprep.subr.mxu0 0.0
        %478 = vmatpush1.msra.mxu0 0.0
        %479 = vmatprep.subr.mxu0 0.0
        %480 = vmatpush1.msra.mxu0 0.0
        %481 = vmatprep.subr.mxu0 0.0
        %482 = vmatpush1.msra.mxu0 0.0
        %483 = vmatprep.subr.mxu0 0.0
        %484 = vmatpush1.msra.mxu0 0.0
        %485 = vmatprep.subr.mxu0 0.0
        %486 = vmatpush1.msra.mxu0 0.0
        %487 = vmatprep.subr.mxu0 0.0
        %488 = vmatpush1.msra.mxu0 0.0
        %489 = vmatprep.subr.mxu0 0.0
        %490 = vmatpush1.msra.mxu0 0.0
        %491 = vmatprep.subr.mxu0 0.0
        %492 = vmatpush1.msra.mxu0 0.0
        %493 = vmatprep.subr.mxu0 0.0
        %494 = vmatpush1.msra.mxu0 0.0
        %495 = vmatprep.subr.mxu0 0.0
        %496 = vmatpush1.msra.mxu0 0.0
        %497 = vmatprep.subr.mxu0 0.0
        %498 = vmatpush1.msra.mxu0 0.0
        %499 = vmatprep.subr.mxu0 0.0
        %500 = vmatpush1.msra.mxu0 0.0
        %501 = vmatprep.subr.mxu0 0.0
        %502 = vmatpush1.msra.mxu0 0.0
        %503 = vmatprep.subr.mxu0 0.0
        %504 = vmatpush1.msra.mxu0 0.0
        %505 = vmatprep.subr.mxu0 0.0
        %506 = vmatpush1.msra.mxu0 0.0
        %507 = vmatprep.subr.mxu0 0.0
        %508 = vmatpush1.msra.mxu0 0.0
        %509 = vmatprep.subr.mxu0 0.0
        %510 = vmatpush1.msra.mxu0 0.0
        %511 = vmatprep.subr.mxu0 0.0
        %512 = vmatpush1.msra.mxu0 0.0
        %513 = vmatprep.subr.mxu0 0.0
        %514 = vmatpush1.msra.mxu0 0.0
        %515 = vmatprep.mubr.f32.mxu0 0.0
        %516 = vmatmul.mubr.f32.gmra.mrb[0].mxu0 %v449
        %v517 = vpop.f32.mrb[0].mxu0
        %v518 = vadd.f32 %v445, %v517
        %v519 = vpop.f32.mrb[0].mxu0
        %520 = vdwg.mxu0
        %v521 = vld [vmem:[#allocation2] sm:$0xff]
        %v522 = vsub.f32 %v518, %v521
        %v523 = vmul.f32 %v522, 0.5
        %v524 = vadd.f32 %v521, %v523
        %vm525 = vcmp.ge.f32.partialorder %v524, 1.0
        %v526 = vsel %vm525, 1, 0
        %v527 = vcvt.s32.f32 %v526
        %v528 = vsub.f32 1.0, %v527
        %v529 = vmul.f32 %v524, %v528
        %vm530 = vcmask 785408
        %531 = vst.msk [vmem:[#allocation2] sm:$0xff] %vm530, %v529
        %v532 = vmul.f32 %v527, 0.25
        %534 = vrot.lane.b32.xlu0 %v532, 112
        %v535 = vpop.permute.xlu0 %534
        %v537 = vcombine.high %v532, 0.0
        %v539 = vunpack.c.l.s4 1983009808
        %v540 = vunpack.c.0.s8 %v539
        %v541 = vlaneseq
        %v542 = vshrl.u32 %v541, 7
        %v543 = vsub.s32 %v540, %v542
        %v544 = vrot.slane %v532, %v543
        %v546 = vunpack.c.l.s4 1983009808
        %v547 = vunpack.c.0.s8 %v546
        %v548 = vlaneseq
        %v549 = vshrl.u32 %v548, 7
        %v550 = vsub.s32 %v547, %v549
        %v551 = vrot.slane %v537, %v550
        %v552 = vcombine.high %v535, 0.0
        %v554 = vunpack.c.l.s4 1983009808
        %v555 = vunpack.c.0.s8 %v554
        %v556 = vlaneseq
        %v557 = vshrl.u32 %v556, 7
        %v558 = vsub.s32 %v555, %v557
        %v559 = vrot.slane %v535, %v558
        %v561 = vunpack.c.l.s4 1983009808
        %v562 = vunpack.c.0.s8 %v561
        %v563 = vlaneseq
        %v564 = vshrl.u32 %v563, 7
        %v565 = vsub.s32 %v562, %v564
        %v566 = vrot.slane %v552, %v565
        %v567 = vcombine.low %v544, %v559
        %v568 = vcombine.high %v544, %v559
        %v570 = vunpack.c.l.s4 1934713408
        %v571 = vunpack.c.0.s8 %v570
        %v572 = vlaneseq
        %v573 = vshrl.u32 %v572, 7
        %v574 = vsub.s32 %v571, %v573
        %v575 = vrot.slane %v567, %v574
        %v577 = vunpack.c.l.s4 1934713408
        %v578 = vunpack.c.0.s8 %v577
        %v579 = vlaneseq
        %v580 = vshrl.u32 %v579, 7
        %v581 = vsub.s32 %v578, %v580
        %v582 = vrot.slane %v568, %v581
        %v583 = vcombine.low %v551, %v566
        %v584 = vcombine.high %v551, %v566
        %v586 = vunpack.c.l.s4 1934713408
        %v587 = vunpack.c.0.s8 %v586
        %v588 = vlaneseq
        %v589 = vshrl.u32 %v588, 7
        %v590 = vsub.s32 %v587, %v589
        %v591 = vrot.slane %v583, %v590
        %v593 = vunpack.c.l.s4 1934713408
        %v594 = vunpack.c.0.s8 %v593
        %v595 = vlaneseq
        %v596 = vshrl.u32 %v595, 7
        %v597 = vsub.s32 %v594, %v596
        %v598 = vrot.slane %v584, %v597
        %v599 = vcombine.high %v575, 0.0
        %v600 = vcombine.high %v582, 0.0
        %v601 = vcombine.high %v591, 0.0
        %v602 = vcombine.high %v598, 0.0
        %v603 = vcombine.low %v575, %v582
        %v605 = vunpack.c.l.s4 1983009808
        %v606 = vunpack.c.0.s8 %v605
        %v607 = vlaneseq
        %v608 = vshrl.u32 %v607, 7
        %v609 = vsub.s32 %v606, %v608
        %v610 = vrot.slane %v603, %v609
        %v611 = vcombine.low %v599, %v600
        %v613 = vunpack.c.l.s4 1983009808
        %v614 = vunpack.c.0.s8 %v613
        %v615 = vlaneseq
        %v616 = vshrl.u32 %v615, 7
        %v617 = vsub.s32 %v614, %v616
        %v618 = vrot.slane %v611, %v617
        %v619 = vcombine.low %v591, %v598
        %v621 = vunpack.c.l.s4 1983009808
        %v622 = vunpack.c.0.s8 %v621
        %v623 = vlaneseq
        %v624 = vshrl.u32 %v623, 7
        %v625 = vsub.s32 %v622, %v624
        %v626 = vrot.slane %v619, %v625
        %v627 = vcombine.low %v601, %v602
        %v629 = vunpack.c.l.s4 1983009808
        %v630 = vunpack.c.0.s8 %v629
        %v631 = vlaneseq
        %v632 = vshrl.u32 %v631, 7
        %v633 = vsub.s32 %v630, %v632
        %v634 = vrot.slane %v627, %v633
        %v635 = vcombine.low %v610, %v618
        %v637 = vunpack.c.l.s4 1934713408
        %v638 = vunpack.c.0.s8 %v637
        %v639 = vlaneseq
        %v640 = vshrl.u32 %v639, 7
        %v641 = vsub.s32 %v638, %v640
        %v642 = vrot.slane %v635, %v641
        %v643 = vcombine.low %v626, %v634
        %v645 = vunpack.c.l.s4 1934713408
        %v646 = vunpack.c.0.s8 %v645
        %v647 = vlaneseq
        %v648 = vshrl.u32 %v647, 7
        %v649 = vsub.s32 %v646, %v648
        %v650 = vrot.slane %v643, %v649
        %v651 = vcombine.low %v642, %v650
        %v652 = vcombine.high %v642, %v650
        %v653 = vpack.c.bf16 %v651, %v651
        %v654 = vpack.c.bf16 %v652, %v652
        %656 = vrot.lane.b32.xlu0 %v527, 112
        %v657 = vpop.permute.xlu0 %656
        %658 = vrot.lane.b32.xlu0 %v527, 96
        %v659 = vpop.permute.xlu0 %658
        %660 = vrot.lane.b32.xlu0 %v657, 96
        %v661 = vpop.permute.xlu0 %660
        %v664 = vcombine.high %v659, 0.0
        %v666 = vunpack.c.l.s4 1983009808
        %v667 = vunpack.c.0.s8 %v666
        %v668 = vlaneseq
        %v669 = vshrl.u32 %v668, 7
        %v670 = vsub.s32 %v667, %v669
        %v671 = vrot.slane %v659, %v670
        %v673 = vunpack.c.l.s4 1983009808
        %v674 = vunpack.c.0.s8 %v673
        %v675 = vlaneseq
        %v676 = vshrl.u32 %v675, 7
        %v677 = vsub.s32 %v674, %v676
        %v678 = vrot.slane %v664, %v677
        %v679 = vcombine.high %v661, 0.0
        %v681 = vunpack.c.l.s4 1983009808
        %v682 = vunpack.c.0.s8 %v681
        %v683 = vlaneseq
        %v684 = vshrl.u32 %v683, 7
        %v685 = vsub.s32 %v682, %v684
        %v686 = vrot.slane %v661, %v685
        %v688 = vunpack.c.l.s4 1983009808
        %v689 = vunpack.c.0.s8 %v688
        %v690 = vlaneseq
        %v691 = vshrl.u32 %v690, 7
        %v692 = vsub.s32 %v689, %v691
        %v693 = vrot.slane %v679, %v692
        %v694 = vcombine.low %v671, %v686
        %v695 = vcombine.high %v671, %v686
        %v697 = vunpack.c.l.s4 1934713408
        %v698 = vunpack.c.0.s8 %v697
        %v699 = vlaneseq
        %v700 = vshrl.u32 %v699, 7
        %v701 = vsub.s32 %v698, %v700
        %v702 = vrot.slane %v694, %v701
        %v704 = vunpack.c.l.s4 1934713408
        %v705 = vunpack.c.0.s8 %v704
        %v706 = vlaneseq
        %v707 = vshrl.u32 %v706, 7
        %v708 = vsub.s32 %v705, %v707
        %v709 = vrot.slane %v695, %v708
        %v710 = vcombine.low %v678, %v693
        %v711 = vcombine.high %v678, %v693
        %v713 = vunpack.c.l.s4 1934713408
        %v714 = vunpack.c.0.s8 %v713
        %v715 = vlaneseq
        %v716 = vshrl.u32 %v715, 7
        %v717 = vsub.s32 %v714, %v716
        %v718 = vrot.slane %v710, %v717
        %v720 = vunpack.c.l.s4 1934713408
        %v721 = vunpack.c.0.s8 %v720
        %v722 = vlaneseq
        %v723 = vshrl.u32 %v722, 7
        %v724 = vsub.s32 %v721, %v723
        %v725 = vrot.slane %v711, %v724
        %v726 = vcombine.high %v702, 0.0
        %v727 = vcombine.high %v709, 0.0
        %v728 = vcombine.high %v718, 0.0
        %v729 = vcombine.high %v725, 0.0
        %v730 = vcombine.low %v702, %v709
        %v732 = vunpack.c.l.s4 1983009808
        %v733 = vunpack.c.0.s8 %v732
        %v734 = vlaneseq
        %v735 = vshrl.u32 %v734, 7
        %v736 = vsub.s32 %v733, %v735
        %v737 = vrot.slane %v730, %v736
        %v738 = vcombine.low %v726, %v727
        %v740 = vunpack.c.l.s4 1983009808
        %v741 = vunpack.c.0.s8 %v740
        %v742 = vlaneseq
        %v743 = vshrl.u32 %v742, 7
        %v744 = vsub.s32 %v741, %v743
        %v745 = vrot.slane %v738, %v744
        %v746 = vcombine.low %v718, %v725
        %v748 = vunpack.c.l.s4 1983009808
        %v749 = vunpack.c.0.s8 %v748
        %v750 = vlaneseq
        %v751 = vshrl.u32 %v750, 7
        %v752 = vsub.s32 %v749, %v751
        %v753 = vrot.slane %v746, %v752
        %v754 = vcombine.low %v728, %v729
        %v756 = vunpack.c.l.s4 1983009808
        %v757 = vunpack.c.0.s8 %v756
        %v758 = vlaneseq
        %v759 = vshrl.u32 %v758, 7
        %v760 = vsub.s32 %v757, %v759
        %v761 = vrot.slane %v754, %v760
        %v762 = vcombine.low %v737, %v745
        %v764 = vunpack.c.l.s4 1934713408
        %v765 = vunpack.c.0.s8 %v764
        %v766 = vlaneseq
        %v767 = vshrl.u32 %v766, 7
        %v768 = vsub.s32 %v765, %v767
        %v769 = vrot.slane %v762, %v768
        %v770 = vcombine.low %v753, %v761
        %v772 = vunpack.c.l.s4 1934713408
        %v773 = vunpack.c.0.s8 %v772
        %v774 = vlaneseq
        %v775 = vshrl.u32 %v774, 7
        %v776 = vsub.s32 %v773, %v775
        %v777 = vrot.slane %v770, %v776
        %v778 = vcombine.low %v769, %v777
        %v779 = vcombine.high %v769, %v777
        %v780 = vpack.c.bf16 %v778, %v778
        %v781 = vpack.c.bf16 %v779, %v779
        %782 = vrot.lane.b32.xlu0 %v527, 64
        %v783 = vpop.permute.xlu0 %782
        %784 = vrot.lane.b32.xlu0 %v657, 64
        %v785 = vpop.permute.xlu0 %784
        %v788 = vcombine.high %v783, 0.0
        %v790 = vunpack.c.l.s4 1983009808
        %v791 = vunpack.c.0.s8 %v790
        %v792 = vlaneseq
        %v793 = vshrl.u32 %v792, 7
        %v794 = vsub.s32 %v791, %v793
        %v795 = vrot.slane %v783, %v794
        %v797 = vunpack.c.l.s4 1983009808
        %v798 = vunpack.c.0.s8 %v797
        %v799 = vlaneseq
        %v800 = vshrl.u32 %v799, 7
        %v801 = vsub.s32 %v798, %v800
        %v802 = vrot.slane %v788, %v801
        %v803 = vcombine.high %v785, 0.0
        %v805 = vunpack.c.l.s4 1983009808
        %v806 = vunpack.c.0.s8 %v805
        %v807 = vlaneseq
        %v808 = vshrl.u32 %v807, 7
        %v809 = vsub.s32 %v806, %v808
        %v810 = vrot.slane %v785, %v809
        %v812 = vunpack.c.l.s4 1983009808
        %v813 = vunpack.c.0.s8 %v812
        %v814 = vlaneseq
        %v815 = vshrl.u32 %v814, 7
        %v816 = vsub.s32 %v813, %v815
        %v817 = vrot.slane %v803, %v816
        %v818 = vcombine.low %v795, %v810
        %v819 = vcombine.high %v795, %v810
        %v821 = vunpack.c.l.s4 1934713408
        %v822 = vunpack.c.0.s8 %v821
        %v823 = vlaneseq
        %v824 = vshrl.u32 %v823, 7
        %v825 = vsub.s32 %v822, %v824
        %v826 = vrot.slane %v818, %v825
        %v828 = vunpack.c.l.s4 1934713408
        %v829 = vunpack.c.0.s8 %v828
        %v830 = vlaneseq
        %v831 = vshrl.u32 %v830, 7
        %v832 = vsub.s32 %v829, %v831
        %v833 = vrot.slane %v819, %v832
        %v834 = vcombine.low %v802, %v817
        %v835 = vcombine.high %v802, %v817
        %v837 = vunpack.c.l.s4 1934713408
        %v838 = vunpack.c.0.s8 %v837
        %v839 = vlaneseq
        %v840 = vshrl.u32 %v839, 7
        %v841 = vsub.s32 %v838, %v840
        %v842 = vrot.slane %v834, %v841
        %v844 = vunpack.c.l.s4 1934713408
        %v845 = vunpack.c.0.s8 %v844
        %v846 = vlaneseq
        %v847 = vshrl.u32 %v846, 7
        %v848 = vsub.s32 %v845, %v847
        %v849 = vrot.slane %v835, %v848
        %v850 = vcombine.high %v826, 0.0
        %v851 = vcombine.high %v833, 0.0
        %v852 = vcombine.high %v842, 0.0
        %v853 = vcombine.high %v849, 0.0
        %v854 = vcombine.low %v826, %v833
        %v856 = vunpack.c.l.s4 1983009808
        %v857 = vunpack.c.0.s8 %v856
        %v858 = vlaneseq
        %v859 = vshrl.u32 %v858, 7
        %v860 = vsub.s32 %v857, %v859
        %v861 = vrot.slane %v854, %v860
        %v862 = vcombine.low %v850, %v851
        %v864 = vunpack.c.l.s4 1983009808
        %v865 = vunpack.c.0.s8 %v864
        %v866 = vlaneseq
        %v867 = vshrl.u32 %v866, 7
        %v868 = vsub.s32 %v865, %v867
        %v869 = vrot.slane %v862, %v868
        %v870 = vcombine.low %v842, %v849
        %v872 = vunpack.c.l.s4 1983009808
        %v873 = vunpack.c.0.s8 %v872
        %v874 = vlaneseq
        %v875 = vshrl.u32 %v874, 7
        %v876 = vsub.s32 %v873, %v875
        %v877 = vrot.slane %v870, %v876
        %v878 = vcombine.low %v852, %v853
        %v880 = vunpack.c.l.s4 1983009808
        %v881 = vunpack.c.0.s8 %v880
        %v882 = vlaneseq
        %v883 = vshrl.u32 %v882, 7
        %v884 = vsub.s32 %v881, %v883
        %v885 = vrot.slane %v878, %v884
        %v886 = vcombine.low %v861, %v869
        %v888 = vunpack.c.l.s4 1934713408
        %v889 = vunpack.c.0.s8 %v888
        %v890 = vlaneseq
        %v891 = vshrl.u32 %v890, 7
        %v892 = vsub.s32 %v889, %v891
        %v893 = vrot.slane %v886, %v892
        %v894 = vcombine.low %v877, %v885
        %v896 = vunpack.c.l.s4 1934713408
        %v897 = vunpack.c.0.s8 %v896
        %v898 = vlaneseq
        %v899 = vshrl.u32 %v898, 7
        %v900 = vsub.s32 %v897, %v899
        %v901 = vrot.slane %v894, %v900
        %v902 = vcombine.low %v893, %v901
        %v903 = vcombine.high %v893, %v901
        %v904 = vpack.c.bf16 %v902, %v902
        %v905 = vpack.c.bf16 %v903, %v903
        %vm906 = vcmask 130048
        %v908 = vsel %vm906, %v653, 0
        %v911 = vsel %vm906, %v780, 0
        %913 = vmatprep.subr.bf16.mxu0 0
        %914 = vmatpush1.bf16.xpose.msra.mxu0 %v911
        %915 = vmatprep.subr.bf16.mxu0 0
        %916 = vmatpush1.bf16.xpose.msra.mxu0 0
        %917 = vmatprep.subr.bf16.mxu0 0
        %918 = vmatpush1.bf16.xpose.msra.mxu0 0
        %919 = vmatprep.subr.bf16.mxu0 0
        %920 = vmatpush1.bf16.xpose.msra.mxu0 0
        %921 = vmatprep.subr.bf16.mxu0 0
        %922 = vmatpush1.bf16.xpose.msra.mxu0 0
        %923 = vmatprep.subr.bf16.mxu0 0
        %924 = vmatpush1.bf16.xpose.msra.mxu0 0
        %925 = vmatprep.subr.bf16.mxu0 0
        %926 = vmatpush1.bf16.xpose.msra.mxu0 0
        %927 = vmatprep.subr.bf16.mxu0 0
        %928 = vmatpush1.bf16.xpose.msra.mxu0 0
        %929 = vmatprep.subr.bf16.mxu0 0
        %930 = vmatpush1.bf16.xpose.msra.mxu0 0
        %931 = vmatprep.subr.bf16.mxu0 0
        %932 = vmatpush1.bf16.xpose.msra.mxu0 0
        %933 = vmatprep.subr.bf16.mxu0 0
        %934 = vmatpush1.bf16.xpose.msra.mxu0 0
        %935 = vmatprep.subr.bf16.mxu0 0
        %936 = vmatpush1.bf16.xpose.msra.mxu0 0
        %937 = vmatprep.subr.bf16.mxu0 0
        %938 = vmatpush1.bf16.xpose.msra.mxu0 0
        %939 = vmatprep.subr.bf16.mxu0 0
        %940 = vmatpush1.bf16.xpose.msra.mxu0 0
        %941 = vmatprep.subr.bf16.mxu0 0
        %942 = vmatpush1.bf16.xpose.msra.mxu0 0
        %943 = vmatprep.subr.bf16.mxu0 0
        %944 = vmatpush1.bf16.xpose.msra.mxu0 0
        %945 = vmatprep.mubr.bf16.mxu0 0
        %946 = vmatmul.mubr.bf16.gmra.mrb[0].mxu0 %v908
        %v947 = vpop.f32.mrb[0].mxu0
        %v948 = vadd.f32 0.0, %v947
        %v949 = vpop.f32.mrb[0].mxu0
        %v950 = vpop.f32.mrb[0].mxu0
        %v951 = vpop.f32.mrb[0].mxu0
        %952 = vdwg.mxu0
        %v954 = vsel %vm906, %v654, 0
        %v957 = vsel %vm906, %v781, 0
        %959 = vmatprep.subr.bf16.mxu0 0
        %960 = vmatpush1.bf16.xpose.msra.mxu0 %v957
        %961 = vmatprep.subr.bf16.mxu0 0
        %962 = vmatpush1.bf16.xpose.msra.mxu0 0
        %963 = vmatprep.subr.bf16.mxu0 0
        %964 = vmatpush1.bf16.xpose.msra.mxu0 0
        %965 = vmatprep.subr.bf16.mxu0 0
        %966 = vmatpush1.bf16.xpose.msra.mxu0 0
        %967 = vmatprep.subr.bf16.mxu0 0
        %968 = vmatpush1.bf16.xpose.msra.mxu0 0
        %969 = vmatprep.subr.bf16.mxu0 0
        %970 = vmatpush1.bf16.xpose.msra.mxu0 0
        %971 = vmatprep.subr.bf16.mxu0 0
        %972 = vmatpush1.bf16.xpose.msra.mxu0 0
        %973 = vmatprep.subr.bf16.mxu0 0
        %974 = vmatpush1.bf16.xpose.msra.mxu0 0
        %975 = vmatprep.subr.bf16.mxu0 0
        %976 = vmatpush1.bf16.xpose.msra.mxu0 0
        %977 = vmatprep.subr.bf16.mxu0 0
        %978 = vmatpush1.bf16.xpose.msra.mxu0 0
        %979 = vmatprep.subr.bf16.mxu0 0
        %980 = vmatpush1.bf16.xpose.msra.mxu0 0
        %981 = vmatprep.subr.bf16.mxu0 0
        %982 = vmatpush1.bf16.xpose.msra.mxu0 0
        %983 = vmatprep.subr.bf16.mxu0 0
        %984 = vmatpush1.bf16.xpose.msra.mxu0 0
        %985 = vmatprep.subr.bf16.mxu0 0
        %986 = vmatpush1.bf16.xpose.msra.mxu0 0
        %987 = vmatprep.subr.bf16.mxu0 0
        %988 = vmatpush1.bf16.xpose.msra.mxu0 0
        %989 = vmatprep.subr.bf16.mxu0 0
        %990 = vmatpush1.bf16.xpose.msra.mxu0 0
        %991 = vmatprep.mubr.bf16.mxu0 0
        %992 = vmatmul.mubr.bf16.gmra.mrb[0].mxu0 %v954
        %v993 = vpop.f32.mrb[0].mxu0
        %v994 = vadd.f32 0.0, %v993
        %v995 = vpop.f32.mrb[0].mxu0
        %v996 = vpop.f32.mrb[0].mxu0
        %v997 = vpop.f32.mrb[0].mxu0
        %998 = vdwg.mxu0
        %vm999 = vcmask 64512
        %1000 = vst.msk [vmem:[%s417] sm:$0xff] %vm999, %v948
        %1001 = vst.msk [vmem:[%s417 + $0x8] sm:$0xff] %vm999, %v994
        %v1002 = vpack.c.bf16 %v948, %v948
        %v1003 = vpack.c.bf16 %v994, %v994
        %v1005 = vsel %vm999, %v1002, 0
        %vm1007 = vcmask 1043456
        %v1009 = vsel %vm1007, %v904, 0
        %1011 = vmatprep.subr.bf16.mxu0 0
        %1012 = vmatpush1.bf16.msra.mxu0 %v1009
        %1013 = vmatprep.subr.bf16.mxu0 0
        %1014 = vmatpush1.bf16.msra.mxu0 0
        %1015 = vmatprep.subr.bf16.mxu0 0
        %1016 = vmatpush1.bf16.msra.mxu0 0
        %1017 = vmatprep.subr.bf16.mxu0 0
        %1018 = vmatpush1.bf16.msra.mxu0 0
        %1019 = vmatprep.subr.bf16.mxu0 0
        %1020 = vmatpush1.bf16.msra.mxu0 0
        %1021 = vmatprep.subr.bf16.mxu0 0
        %1022 = vmatpush1.bf16.msra.mxu0 0
        %1023 = vmatprep.subr.bf16.mxu0 0
        %1024 = vmatpush1.bf16.msra.mxu0 0
        %1025 = vmatprep.subr.bf16.mxu0 0
        %1026 = vmatpush1.bf16.msra.mxu0 0
        %1027 = vmatprep.subr.bf16.mxu0 0
        %1028 = vmatpush1.bf16.msra.mxu0 0
        %1029 = vmatprep.subr.bf16.mxu0 0
        %1030 = vmatpush1.bf16.msra.mxu0 0
        %1031 = vmatprep.subr.bf16.mxu0 0
        %1032 = vmatpush1.bf16.msra.mxu0 0
        %1033 = vmatprep.subr.bf16.mxu0 0
        %1034 = vmatpush1.bf16.msra.mxu0 0
        %1035 = vmatprep.subr.bf16.mxu0 0
        %1036 = vmatpush1.bf16.msra.mxu0 0
        %1037 = vmatprep.subr.bf16.mxu0 0
        %1038 = vmatpush1.bf16.msra.mxu0 0
        %1039 = vmatprep.subr.bf16.mxu0 0
        %1040 = vmatpush1.bf16.msra.mxu0 0
        %1041 = vmatprep.subr.bf16.mxu0 0
        %1042 = vmatpush1.bf16.msra.mxu0 0
        %1043 = vmatprep.mubr.bf16.mxu0 0
        %1044 = vmatmul.mubr.bf16.gmra.mrb[0].mxu0 %v1005
        %v1045 = vpop.f32.mrb[0].mxu0
        %v1046 = vadd.f32 0.0, %v1045
        %v1047 = vpop.f32.mrb[0].mxu0
        %v1048 = vpop.f32.mrb[0].mxu0
        %v1049 = vpop.f32.mrb[0].mxu0
        %1050 = vdwg.mxu0
        %v1052 = vsel %vm999, %v1003, 0
        %v1055 = vsel %vm1007, %v905, 0
        %1057 = vmatprep.subr.bf16.mxu0 0
        %1058 = vmatpush1.bf16.msra.mxu0 %v1055
        %1059 = vmatprep.subr.bf16.mxu0 0
        %1060 = vmatpush1.bf16.msra.mxu0 0
        %1061 = vmatprep.subr.bf16.mxu0 0
        %1062 = vmatpush1.bf16.msra.mxu0 0
        %1063 = vmatprep.subr.bf16.mxu0 0
        %1064 = vmatpush1.bf16.msra.mxu0 0
        %1065 = vmatprep.subr.bf16.mxu0 0
        %1066 = vmatpush1.bf16.msra.mxu0 0
        %1067 = vmatprep.subr.bf16.mxu0 0
        %1068 = vmatpush1.bf16.msra.mxu0 0
        %1069 = vmatprep.subr.bf16.mxu0 0
        %1070 = vmatpush1.bf16.msra.mxu0 0
        %1071 = vmatprep.subr.bf16.mxu0 0
        %1072 = vmatpush1.bf16.msra.mxu0 0
        %1073 = vmatprep.subr.bf16.mxu0 0
        %1074 = vmatpush1.bf16.msra.mxu0 0
        %1075 = vmatprep.subr.bf16.mxu0 0
        %1076 = vmatpush1.bf16.msra.mxu0 0
        %1077 = vmatprep.subr.bf16.mxu0 0
        %1078 = vmatpush1.bf16.msra.mxu0 0
        %1079 = vmatprep.subr.bf16.mxu0 0
        %1080 = vmatpush1.bf16.msra.mxu0 0
        %1081 = vmatprep.subr.bf16.mxu0 0
        %1082 = vmatpush1.bf16.msra.mxu0 0
        %1083 = vmatprep.subr.bf16.mxu0 0
        %1084 = vmatpush1.bf16.msra.mxu0 0
        %1085 = vmatprep.subr.bf16.mxu0 0
        %1086 = vmatpush1.bf16.msra.mxu0 0
        %1087 = vmatprep.subr.bf16.mxu0 0
        %1088 = vmatpush1.bf16.msra.mxu0 0
        %1089 = vmatprep.mubr.bf16.mxu0 0
        %1090 = vmatmul.mubr.bf16.gmra.mrb[0].mxu0 %v1052
        %v1091 = vpop.f32.mrb[0].mxu0
        %v1092 = vadd.f32 0.0, %v1091
        %v1093 = vpop.f32.mrb[0].mxu0
        %v1094 = vpop.f32.mrb[0].mxu0
        %v1095 = vpop.f32.mrb[0].mxu0
        %1096 = vdwg.mxu0
        %v1097 = vcombine.high %v1046, 0.0
        %v1099 = vunpack.c.l.s4 1983009808
        %v1100 = vunpack.c.0.s8 %v1099
        %v1101 = vlaneseq
        %v1102 = vshrl.u32 %v1101, 7
        %v1103 = vsub.s32 %v1100, %v1102
        %v1104 = vrot.slane %v1046, %v1103
        %v1106 = vunpack.c.l.s4 1983009808
        %v1107 = vunpack.c.0.s8 %v1106
        %v1108 = vlaneseq
        %v1109 = vshrl.u32 %v1108, 7
        %v1110 = vsub.s32 %v1107, %v1109
        %v1111 = vrot.slane %v1097, %v1110
        %v1112 = vcombine.high %v1092, 0.0
        %v1114 = vunpack.c.l.s4 1983009808
        %v1115 = vunpack.c.0.s8 %v1114
        %v1116 = vlaneseq
        %v1117 = vshrl.u32 %v1116, 7
        %v1118 = vsub.s32 %v1115, %v1117
        %v1119 = vrot.slane %v1092, %v1118
        %v1121 = vunpack.c.l.s4 1983009808
        %v1122 = vunpack.c.0.s8 %v1121
        %v1123 = vlaneseq
        %v1124 = vshrl.u32 %v1123, 7
        %v1125 = vsub.s32 %v1122, %v1124
        %v1126 = vrot.slane %v1112, %v1125
        %v1127 = vcombine.low %v1104, %v1119
        %v1128 = vcombine.high %v1104, %v1119
        %v1130 = vunpack.c.l.s4 1934713408
        %v1131 = vunpack.c.0.s8 %v1130
        %v1132 = vlaneseq
        %v1133 = vshrl.u32 %v1132, 7
        %v1134 = vsub.s32 %v1131, %v1133
        %v1135 = vrot.slane %v1127, %v1134
        %v1137 = vunpack.c.l.s4 1934713408
        %v1138 = vunpack.c.0.s8 %v1137
        %v1139 = vlaneseq
        %v1140 = vshrl.u32 %v1139, 7
        %v1141 = vsub.s32 %v1138, %v1140
        %v1142 = vrot.slane %v1128, %v1141
        %v1143 = vcombine.low %v1111, %v1126
        %v1144 = vcombine.high %v1111, %v1126
        %v1146 = vunpack.c.l.s4 1934713408
        %v1147 = vunpack.c.0.s8 %v1146
        %v1148 = vlaneseq
        %v1149 = vshrl.u32 %v1148, 7
        %v1150 = vsub.s32 %v1147, %v1149
        %v1151 = vrot.slane %v1143, %v1150
        %v1153 = vunpack.c.l.s4 1934713408
        %v1154 = vunpack.c.0.s8 %v1153
        %v1155 = vlaneseq
        %v1156 = vshrl.u32 %v1155, 7
        %v1157 = vsub.s32 %v1154, %v1156
        %v1158 = vrot.slane %v1144, %v1157
        %v1159 = vcombine.high %v1135, 0.0
        %v1160 = vcombine.high %v1142, 0.0
        %v1161 = vcombine.high %v1151, 0.0
        %v1162 = vcombine.high %v1158, 0.0
        %v1163 = vcombine.low %v1135, %v1142
        %v1165 = vunpack.c.l.s4 1983009808
        %v1166 = vunpack.c.0.s8 %v1165
        %v1167 = vlaneseq
        %v1168 = vshrl.u32 %v1167, 7
        %v1169 = vsub.s32 %v1166, %v1168
        %v1170 = vrot.slane %v1163, %v1169
        %v1171 = vcombine.low %v1159, %v1160
        %v1173 = vunpack.c.l.s4 1983009808
        %v1174 = vunpack.c.0.s8 %v1173
        %v1175 = vlaneseq
        %v1176 = vshrl.u32 %v1175, 7
        %v1177 = vsub.s32 %v1174, %v1176
        %v1178 = vrot.slane %v1171, %v1177
        %v1179 = vcombine.low %v1151, %v1158
        %v1181 = vunpack.c.l.s4 1983009808
        %v1182 = vunpack.c.0.s8 %v1181
        %v1183 = vlaneseq
        %v1184 = vshrl.u32 %v1183, 7
        %v1185 = vsub.s32 %v1182, %v1184
        %v1186 = vrot.slane %v1179, %v1185
        %v1187 = vcombine.low %v1161, %v1162
        %v1189 = vunpack.c.l.s4 1983009808
        %v1190 = vunpack.c.0.s8 %v1189
        %v1191 = vlaneseq
        %v1192 = vshrl.u32 %v1191, 7
        %v1193 = vsub.s32 %v1190, %v1192
        %v1194 = vrot.slane %v1187, %v1193
        %v1195 = vcombine.low %v1170, %v1178
        %v1197 = vunpack.c.l.s4 1934713408
        %v1198 = vunpack.c.0.s8 %v1197
        %v1199 = vlaneseq
        %v1200 = vshrl.u32 %v1199, 7
        %v1201 = vsub.s32 %v1198, %v1200
        %v1202 = vrot.slane %v1195, %v1201
        %v1203 = vcombine.low %v1186, %v1194
        %v1205 = vunpack.c.l.s4 1934713408
        %v1206 = vunpack.c.0.s8 %v1205
        %v1207 = vlaneseq
        %v1208 = vshrl.u32 %v1207, 7
        %v1209 = vsub.s32 %v1206, %v1208
        %v1210 = vrot.slane %v1203, %v1209
        %v1211 = vcombine.low %v1202, %v1210
        %v1212 = vcombine.high %v1202, %v1210
        %1214 = vrot.lane.b32.xlu0 %v1212, 16
        %v1215 = vpop.permute.xlu0 %1214
        %v1217 = vsel %vm906, %v1211, %v1215
        %v1218 = vld [vmem:[#allocation3] sm:$0xff]
        %v1219 = vsub.f32 %v1217, %v1218
        %v1220 = vmul.f32 %v1219, 0.5
        %v1221 = vadd.f32 %v1218, %v1220
        %vm1222 = vcmp.ge.f32.partialorder %v1221, 1.0
        %v1223 = vsel %vm1222, 1, 0
        %v1224 = vcvt.s32.f32 %v1223
        %v1225 = vsub.f32 1.0, %v1224
        %v1226 = vmul.f32 %v1221, %v1225
        %1227 = vst.msk [vmem:[#allocation3] sm:$0xff] %vm447, %v1226
        %v1228 = vpack.c.bf16 %v1224, %v1224
        %v1229 = vld [vmem:[%s3] sm:$0xf]
        %v1230 = vld [vmem:[%s3 + $0x4] sm:$0xf]
        %v1231 = vld [vmem:[%s3 + $0x8] sm:$0xf]
        %v1232 = vld [vmem:[%s3 + $0xc] sm:$0xf]
        %v1233 = vld [vmem:[%s4] sm:$0x1]
        %v1235 = vlaneseq
        %v1236 = vshrl.u32 %v1235, 7
        %v1237 = vsub.s32 0, %v1236
        %v1238 = vrot.slane %v1233, %v1237
        %v1244 = vunpack.c.l.b16 %v1229
        %v1245 = vunpack.c.l.b16 %v1230
        %v1246 = vunpack.c.l.b16 %v1231
        %v1247 = vunpack.c.l.b16 %v1232
        %v1248 = vpack.c.b16 %v1245, %v1244
        %v1249 = vpack.c.b16 %v1247, %v1246
        %v1253 = vsel %vm447, %v1228, 0
        %1255 = vmatprep.subr.bf16.mxu0 0
        %1256 = vmatpush1.bf16.msra.mxu0 %v1248
        %1257 = vmatprep.subr.bf16.mxu0 0
        %1258 = vmatpush1.bf16.msra.mxu0 %v1249
        %1259 = vmatprep.subr.bf16.mxu0 0
        %1260 = vmatpush1.bf16.msra.mxu0 0
        %1261 = vmatprep.subr.bf16.mxu0 0
        %1262 = vmatpush1.bf16.msra.mxu0 0
        %1263 = vmatprep.subr.bf16.mxu0 0
        %1264 = vmatpush1.bf16.msra.mxu0 0
        %1265 = vmatprep.subr.bf16.mxu0 0
        %1266 = vmatpush1.bf16.msra.mxu0 0
        %1267 = vmatprep.subr.bf16.mxu0 0
        %1268 = vmatpush1.bf16.msra.mxu0 0
        %1269 = vmatprep.subr.bf16.mxu0 0
        %1270 = vmatpush1.bf16.msra.mxu0 0
        %1271 = vmatprep.subr.bf16.mxu0 0
        %1272 = vmatpush1.bf16.msra.mxu0 0
        %1273 = vmatprep.subr.bf16.mxu0 0
        %1274 = vmatpush1.bf16.msra.mxu0 0
        %1275 = vmatprep.subr.bf16.mxu0 0
        %1276 = vmatpush1.bf16.msra.mxu0 0
        %1277 = vmatprep.subr.bf16.mxu0 0
        %1278 = vmatpush1.bf16.msra.mxu0 0
        %1279 = vmatprep.subr.bf16.mxu0 0
        %1280 = vmatpush1.bf16.msra.mxu0 0
        %1281 = vmatprep.subr.bf16.mxu0 0
        %1282 = vmatpush1.bf16.msra.mxu0 0
        %1283 = vmatprep.subr.bf16.mxu0 0
        %1284 = vmatpush1.bf16.msra.mxu0 0
        %1285 = vmatprep.subr.bf16.mxu0 0
        %1286 = vmatpush1.bf16.msra.mxu0 0
        %1287 = vmatprep.mubr.bf16.mxu0 0
        %1288 = vmatmul.mubr.bf16.gmra.mrb[0].mxu0 %v1253
        %v1289 = vpop.f32.mrb[0].mxu0
        %v1290 = vadd.f32 %v1238, %v1289
        %v1291 = vpop.f32.mrb[0].mxu0
        %v1292 = vpop.f32.mrb[0].mxu0
        %v1293 = vpop.f32.mrb[0].mxu0
        %1294 = vdwg.mxu0
        %v1295 = vadd.f32 %v435, %v1290
        %v1296 = vpack.c.bf16 %v1295, %v1295
        %v1297 = vld [vmem:[#allocation7] sm:$0xf]
        %v1298 = vld [vmem:[#allocation7 + $0x4] sm:$0xf]
        %v1299 = vld [vmem:[#allocation7 + $0x8] sm:$0xf]
        %v1300 = vld [vmem:[#allocation7 + $0xc] sm:$0xf]
        %v1301 = vld [vmem:[%s6] sm:$0x1]
        %v1303 = vlaneseq
        %v1304 = vshrl.u32 %v1303, 7
        %v1305 = vsub.s32 0, %v1304
        %v1306 = vrot.slane %v1301, %v1305
        %v1312 = vunpack.c.l.b16 %v1297
        %v1313 = vunpack.c.l.b16 %v1298
        %v1314 = vunpack.c.l.b16 %v1299
        %v1315 = vunpack.c.l.b16 %v1300
        %v1316 = vpack.c.b16 %v1313, %v1312
        %v1317 = vpack.c.b16 %v1315, %v1314
        %v1321 = vsel %vm447, %v1296, 0
        %1323 = vmatprep.subr.bf16.mxu0 0
        %1324 = vmatpush1.bf16.msra.mxu0 %v1316
        %1325 = vmatprep.subr.bf16.mxu0 0
        %1326 = vmatpush1.bf16.msra.mxu0 %v1317
        %1327 = vmatprep.subr.bf16.mxu0 0
        %1328 = vmatpush1.bf16.msra.mxu0 0
        %1329 = vmatprep.subr.bf16.mxu0 0
        %1330 = vmatpush1.bf16.msra.mxu0 0
        %1331 = vmatprep.subr.bf16.mxu0 0
        %1332 = vmatpush1.bf16.msra.mxu0 0
        %1333 = vmatprep.subr.bf16.mxu0 0
        %1334 = vmatpush1.bf16.msra.mxu0 0
        %1335 = vmatprep.subr.bf16.mxu0 0
        %1336 = vmatpush1.bf16.msra.mxu0 0
        %1337 = vmatprep.subr.bf16.mxu0 0
        %1338 = vmatpush1.bf16.msra.mxu0 0
        %1339 = vmatprep.subr.bf16.mxu0 0
        %1340 = vmatpush1.bf16.msra.mxu0 0
        %1341 = vmatprep.subr.bf16.mxu0 0
        %1342 = vmatpush1.bf16.msra.mxu0 0
        %1343 = vmatprep.subr.bf16.mxu0 0
        %1344 = vmatpush1.bf16.msra.mxu0 0
        %1345 = vmatprep.subr.bf16.mxu0 0
        %1346 = vmatpush1.bf16.msra.mxu0 0
        %1347 = vmatprep.subr.bf16.mxu0 0
        %1348 = vmatpush1.bf16.msra.mxu0 0
        %1349 = vmatprep.subr.bf16.mxu0 0
        %1350 = vmatpush1.bf16.msra.mxu0 0
        %1351 = vmatprep.subr.bf16.mxu0 0
        %1352 = vmatpush1.bf16.msra.mxu0 0
        %1353 = vmatprep.subr.bf16.mxu0 0
        %1354 = vmatpush1.bf16.msra.mxu0 0
        %1355 = vmatprep.mubr.bf16.mxu0 0
        %1356 = vmatmul.mubr.bf16.gmra.mrb[0].mxu0 %v1321
        %v1357 = vpop.f32.mrb[0].mxu0
        %v1358 = vadd.f32 %v1306, %v1357
        %v1359 = vpop.f32.mrb[0].mxu0
        %v1360 = vpop.f32.mrb[0].mxu0
        %v1361 = vpop.f32.mrb[0].mxu0
        %1362 = vdwg.mxu0
        %v1363 = vmul.f32 %v1358, 0.5
        %v1364 = vmul.f32 %v1358, 0.044715
        %v1365 = vmul.f32 %v1364, %v1358
        %v1366 = vmul.f32 %v1365, %v1358
        %v1367 = vadd.f32 %v1358, %v1366
        %v1368 = vmul.f32 %v1367, 0.7978846
        %v1369 = vtanh.pop %v1368
        %v1370 = vadd.f32 %v1369, 1.0
        %v1371 = vmul.f32 %v1363, %v1370
        %v1372 = vpack.c.bf16 %v1371, %v1371
        %v1373 = vld [vmem:[%s7] sm:$0xf]
        %v1374 = vld [vmem:[%s7 + $0x4] sm:$0xf]
        %v1375 = vld [vmem:[%s7 + $0x8] sm:$0xf]
        %v1376 = vld [vmem:[%s7 + $0xc] sm:$0xf]
        %v1377 = vld [vmem:[%s7 + $0x10] sm:$0xf]
        %v1378 = vld [vmem:[%s7 + $0x14] sm:$0xf]
        %v1379 = vld [vmem:[%s7 + $0x18] sm:$0xf]
        %v1380 = vld [vmem:[%s7 + $0x1c] sm:$0xf]
        %v1381 = vld [vmem:[%s8] sm:$0x1]
        %v1383 = vlaneseq
        %v1384 = vshrl.u32 %v1383, 7
        %v1385 = vsub.s32 0, %v1384
        %v1386 = vrot.slane %v1381, %v1385
        %v1396 = vunpack.c.l.b16 %v1373
        %v1397 = vunpack.c.l.b16 %v1374
        %v1398 = vunpack.c.l.b16 %v1375
        %v1399 = vunpack.c.l.b16 %v1376
        %v1400 = vunpack.c.l.b16 %v1377
        %v1401 = vunpack.c.l.b16 %v1378
        %v1402 = vunpack.c.l.b16 %v1379
        %v1403 = vunpack.c.l.b16 %v1380
        %v1404 = vpack.c.b16 %v1397, %v1396
        %v1405 = vpack.c.b16 %v1399, %v1398
        %v1406 = vpack.c.b16 %v1401, %v1400
        %v1407 = vpack.c.b16 %v1403, %v1402
        %vm1412 = vcmask 523264
        %v1414 = vsel %vm1412, %v1372, 0
        %1416 = vmatprep.subr.bf16.mxu0 0
        %1417 = vmatpush1.bf16.msra.mxu0 %v1404
        %1418 = vmatprep.subr.bf16.mxu0 0
        %1419 = vmatpush1.bf16.msra.mxu0 %v1405
        %1420 = vmatprep.subr.bf16.mxu0 0
        %1421 = vmatpush1.bf16.msra.mxu0 %v1406
        %1422 = vmatprep.subr.bf16.mxu0 0
        %1423 = vmatpush1.bf16.msra.mxu0 %v1407
        %1424 = vmatprep.subr.bf16.mxu0 0
        %1425 = vmatpush1.bf16.msra.mxu0 0
        %1426 = vmatprep.subr.bf16.mxu0 0
        %1427 = vmatpush1.bf16.msra.mxu0 0
        %1428 = vmatprep.subr.bf16.mxu0 0
        %1429 = vmatpush1.bf16.msra.mxu0 0
        %1430 = vmatprep.subr.bf16.mxu0 0
        %1431 = vmatpush1.bf16.msra.mxu0 0
        %1432 = vmatprep.subr.bf16.mxu0 0
        %1433 = vmatpush1.bf16.msra.mxu0 0
        %1434 = vmatprep.subr.bf16.mxu0 0
        %1435 = vmatpush1.bf16.msra.mxu0 0
        %1436 = vmatprep.subr.bf16.mxu0 0
        %1437 = vmatpush1.bf16.msra.mxu0 0
        %1438 = vmatprep.subr.bf16.mxu0 0
        %1439 = vmatpush1.bf16.msra.mxu0 0
        %1440 = vmatprep.subr.bf16.mxu0 0
        %1441 = vmatpush1.bf16.msra.mxu0 0
        %1442 = vmatprep.subr.bf16.mxu0 0
        %1443 = vmatpush1.bf16.msra.mxu0 0
        %1444 = vmatprep.subr.bf16.mxu0 0
        %1445 = vmatpush1.bf16.msra.mxu0 0
        %1446 = vmatprep.subr.bf16.mxu0 0
        %1447 = vmatpush1.bf16.msra.mxu0 0
        %1448 = vmatprep.mubr.bf16.mxu0 0
        %1449 = vmatmul.mubr.bf16.gmra.mrb[0].mxu0 %v1414
        %v1450 = vpop.f32.mrb[0].mxu0
        %v1451 = vadd.f32 %v1386, %v1450
        %v1452 = vpop.f32.mrb[0].mxu0
        %v1453 = vpop.f32.mrb[0].mxu0
        %v1454 = vpop.f32.mrb[0].mxu0
        %1455 = vdwg.mxu0
        %v1456 = vadd.f32 %v1295, %v1451
        %1457 = vst.msk [vmem:[%s410] sm:$0xff] %vm447, %v1456
        %s1458 = sand.u32 %s248, 1
        %s1459 = scalar_lea.sflag [#allocation6], %s1458
        %s1460 = sand.u32 %s248, 1
        %s1461 = smul.addr %s1460, 8
        %s1462 = scalar_lea.vmem [#allocation9], %s1461
        %s1463 = sand.u32 %s276, 1
        %s1464 = scalar_lea.sflag [#allocation11], %s1463
        %s1465 = sand.u32 %s276, 1
        %s1466 = smul.addr %s1465, 16
        %s1467 = scalar_lea.vmem [#allocation10], %s1466
        // Predicated region
        $region69: #{tpu_custom_call.1} parent=55 // pred_check
          %p1468 = pneg %p258
        $region70: #{tpu_custom_call.1} parent=55 // pred_check_branch
          %1470 = sbr.rel (%p1468) target = $region72
        $region71: #{tpu_custom_call.1} parent=55 // pred_region
          %s1472 = ssub.s32 128, 128
          %1473 = vsyncadd %s1459, %s1472
          %s1474 = smul.addr %s35, 2
          %s1475 = sadd.s32 %s34, %s1474
          %s1476 = smul.addr %s1475, 128
          %s1477 = scalar_lea.hbm %s9, %s1476
          %s1479 = sshll.u32 %s1462, 4
          %s1480 = int_to_ptr.vmem [resolvable:$true] %s1479
          %1482 = dma.vmem_to_hbm [thread:$0]  %s1480, 128, %s1477, %s1459
        $region72: #{tpu_custom_call.1} parent=55 // pred_fallthru
          _
        // Predicated region
        $region73: #{tpu_custom_call.1} parent=55 // pred_check
          %p1483 = pneg %p286
        $region74: #{tpu_custom_call.1} parent=55 // pred_check_branch
          %1485 = sbr.rel (%p1483) target = $region76
        $region75: #{tpu_custom_call.1} parent=55 // pred_region
          %s1487 = ssub.s32 256, 256
          %1488 = vsyncadd %s1464, %s1487
          %s1489 = smul.addr %s34, 2
          %s1490 = smul.addr %s35, 4
          %s1491 = sadd.s32 %s1489, %s1490
          %s1492 = smul.addr %s1491, 128
          %s1493 = scalar_lea.hbm %s10, %s1492
          %s1494 = sshll.u32 %s1467, 4
          %s1495 = int_to_ptr.vmem [resolvable:$true] %s1494
          %1500 = dma.vmem_to_hbm [thread:$0]  %s1495, 256, %s1493, %s1464, 128, 128, 8
        $region76: #{tpu_custom_call.1} parent=55 // pred_fallthru
          _
      $region56: #{tpu_custom_call.1} parent=5 // pred_fallthru
        _
      %p1501 = scmp.le.s32.totalorder 2, %s25
      // Predicated region
      $region77: #{tpu_custom_call.1} parent=5 // pred_check
        %p1502 = pneg %p1501
      $region78: #{tpu_custom_call.1} parent=5 // pred_check_branch
        %1504 = sbr.rel (%p1502) target = $region80
      $region79: #{tpu_custom_call.1} parent=5 // pred_region
        %s1505 = ssub.s32 %s25, 2
        // Predicated region
        $region81: #{tpu_custom_call.1} parent=79 // pred_check
          %p1506 = pneg %p264
        $region82: #{tpu_custom_call.1} parent=79 // pred_check_branch
          %1508 = sbr.rel (%p1506) target = $region84
        $region83: #{tpu_custom_call.1} parent=79 // pred_region
          %s1509 = sand.u32 %s249, 1
          %s1510 = scalar_lea.sflag [#allocation6], %s1509
          %s1511 = sand.u32 %s249, 1
          %s1512 = smul.addr %s1511, 8
          %s1513 = scalar_lea.vmem [#allocation9], %s1512
          %1514 = dma.done %s1510, 128
        $region84: #{tpu_custom_call.1} parent=79 // pred_fallthru
          _
        // Predicated region
        $region85: #{tpu_custom_call.1} parent=79 // pred_check
          %p1515 = pneg %p292
        $region86: #{tpu_custom_call.1} parent=79 // pred_check_branch
          %1517 = sbr.rel (%p1515) target = $region88
        $region87: #{tpu_custom_call.1} parent=79 // pred_region
          %s1518 = sand.u32 %s277, 1
          %s1519 = scalar_lea.sflag [#allocation11], %s1518
          %s1520 = sand.u32 %s277, 1
          %s1521 = smul.addr %s1520, 16
          %s1522 = scalar_lea.vmem [#allocation10], %s1521
          %1523 = dma.done %s1519, 256
        $region88: #{tpu_custom_call.1} parent=79 // pred_fallthru
          _
      $region80: #{tpu_custom_call.1} parent=5 // pred_fallthru
        _
    $region6: #{tpu_custom_call.1} parent=1 // loop_footer
      %s29 = sadd.s32 1, %s25
    $region7: #{tpu_custom_call.1} parent=1 // loop_footer_branch
      %24 = sbr.rel target = $region3
    $region8: #{tpu_custom_call.1} parent=1 // loop_exit
      _
    %1524 = vsyncpa [#allocation5], 1
    %s1525 = scalar_lea.sflag [#allocation5], 1
    %1526 = vsyncpa %s1525, 1
    %1527 = vsyncpa [#allocation8], 1
    %1528 = vsyncpa [#allocation6], 1
    %s1529 = scalar_lea.sflag [#allocation6], 1
    %1530 = vsyncpa %s1529, 1
    %1531 = vsyncpa [#allocation11], 1
    %s1532 = scalar_lea.sflag [#allocation11], 1
    %1533 = vsyncpa %s1532, 1

</llo_original>
